<compile_context>
chip_gen: v6e
topology: v6e:2x2x1
jax: 0.10.0
libtpu: 0.0.40
codegen_flags: <defaults>
</compile_context>

<pallas_src>
from collections import OrderedDict

import jax
import jax.numpy as jnp
from jax.experimental import pallas as pl
from jax.experimental.pallas import tpu as pltpu


# ----------------------------------------------------------------------------
# Pallas kernel: fully fused segmenter hot path
#   (in-kernel im2col) conv1(3x3)+bias+ReLU -> conv2(1x1)+bias
#   -> sigmoid (prob) and logits>0 (hard mask)
# ----------------------------------------------------------------------------
def _run_fused_segmenter(x_guard, w1_gemm, b1_col, w2_col, b2_s, *, C, Cm, H, W):
    """x_guard: [B, C, Ptot] bf16 flat padded image with zero guard bands.

    Ptot = P + 2*G where P = (H+2)*(W+2) (spatially zero-padded image,
    row-major flattened) and G = W+3 (max |tap offset|).  Returns
    (prob [B,1,P] f32, mask [B,1,P] int8) in the same padded-flat layout.
    """
    B = x_guard.shape[0]
    Ptot = x_guard.shape[-1]
    Wp = W + 2
    P = (H + 2) * Wp
    G = Wp + 1
    assert Ptot == P + 2 * G

    def kernel(x_ref, w1_ref, b1_ref, w2_ref, b2_ref, prob_ref, mask_ref):
        # x_ref: (C, Ptot) bf16, w1_ref: (Cm, 9*C) bf16, b1_ref: (Cm,1) f32,
        # w2_ref: (Cm,1) f32, b2_ref: (1,) f32 in SMEM,
        # prob_ref: (1, P) f32, mask_ref: (1, P) int8.
        h = None
        for kh in range(3):
            for kw in range(3):
                t = kh * 3 + kw
                # Tap (kh, kw) of pixel at flat position p is the flat image
                # shifted by (kh-1)*Wp + (kw-1); the guard band keeps every
                # static slice in bounds.
                s = G + (kh - 1) * Wp + (kw - 1)
                xt = x_ref[:, s:s + P]                      # (C, P)   bf16
                wt = w1_ref[:, t * C:(t + 1) * C]           # (Cm, C)  bf16
                d = jnp.dot(wt, xt, preferred_element_type=jnp.float32)
                h = d if h is None else h + d               # (Cm, P)  f32
        h = jnp.maximum(h + b1_ref[...], 0.0)               # bias + ReLU

        # 1x1 conv Cm -> 1: VPU multiply + tiny sublane reduce (no MXU push).
        logits = jnp.sum(h * w2_ref[...], axis=0, keepdims=True) + b2_ref[0]

        prob_ref[...] = 1.0 / (1.0 + jnp.exp(-logits))      # exact sigmoid
        # Exact hard mask: prob > 0.5  <=>  logits > 0 (no approx dependence).
        mask_ref[...] = (logits > 0.0).astype(jnp.int8)

    prob, mask = pl.pallas_call(
        kernel,
        out_shape=(jax.ShapeDtypeStruct((B, 1, P), jnp.float32),
                   jax.ShapeDtypeStruct((B, 1, P), jnp.int8)),
        grid=(B,),
        in_specs=[
            pl.BlockSpec((None, C, Ptot), lambda b: (b, 0, 0)),   # image (bf16)
            pl.BlockSpec((Cm, 9 * C), lambda b: (0, 0)),          # w1 (resident)
            pl.BlockSpec((Cm, 1), lambda b: (0, 0)),              # b1
            pl.BlockSpec((Cm, 1), lambda b: (0, 0)),              # w2
            pl.BlockSpec(memory_space=pltpu.MemorySpace.SMEM),    # b2 scalar
        ],
        out_specs=(
            pl.BlockSpec((None, 1, P), lambda b: (b, 0, 0)),      # prob
            pl.BlockSpec((None, 1, P), lambda b: (b, 0, 0)),      # mask (int8)
        ),
        compiler_params=pltpu.CompilerParams(
            dimension_semantics=("parallel",),
            vmem_limit_bytes=32 * 1024 * 1024),
    )(x_guard, w1_gemm, b1_col, w2_col, b2_s)
    return prob, mask
    # Note: at very large resolutions (per-image working set > a few MiB on
    # v7x's 64 MiB VMEM) the grid would additionally tile rows with a manual
    # halo DMA; unnecessary at these shapes.


# ----------------------------------------------------------------------------
# Glue: parameter init, segmenter wrapper, segmentation_model semantics
# ----------------------------------------------------------------------------
def init_segmenter_params(key, c_in, c_mid):
    """Deterministic synthetic params (PyTorch conv shapes: OIHW)."""
    k1, k2, k3, k4 = jax.random.split(key, 4)
    w1 = jax.random.normal(k1, (c_mid, c_in, 3, 3), jnp.float32) * 0.1
    b1 = jax.random.normal(k2, (c_mid,), jnp.float32) * 0.01
    w2 = jax.random.normal(k3, (1, c_mid, 1, 1), jnp.float32) * 0.1
    b2 = jax.random.normal(k4, (1,), jnp.float32) * 0.01
    # GEMM-ready layout: columns ordered (tap, c_in) with tap = kh*3 + kw.
    w1_gemm = w1.transpose(0, 2, 3, 1).reshape(c_mid, 9 * c_in)
    return dict(
        # original layouts (reference / bookkeeping)
        w1_oihw=w1, b1_vec=b1, w2_oihw=w2, b2_vec=b2,
        # kernel-ready layouts
        w1_gemm=w1_gemm.astype(jnp.bfloat16),   # (Cm, 9*C) bf16
        b1_col=b1.reshape(c_mid, 1),            # (Cm, 1)   f32
        w2_col=w2.reshape(1, c_mid).T,          # (Cm, 1)   f32
        b2_s=b2.reshape(1,),                    # (1,)      f32 (SMEM scalar)
    )


def segmenter_forward(params, x_V):
    """Pallas-backed segmenter: x_V [B,C,H,W] -> (x_VM f32, hard mask int8)."""
    B, C, H, W = x_V.shape
    Cm = params["b1_col"].shape[0]
    Wp = W + 2
    P = (H + 2) * Wp
    G = Wp + 1

    # Cheap prep on the C-channel input only (no 9x expansion, no big pad):
    # spatial zero-pad, bf16 cast, flatten rows, add guard zeros for the taps.
    xp = jnp.pad(x_V, ((0, 0), (0, 0), (1, 1), (1, 1))).astype(jnp.bfloat16)
    x_flat = xp.reshape(B, C, P)
    x_guard = jnp.pad(x_flat, ((0, 0), (0, 0), (G, G)))

    prob_flat, mask_flat = _run_fused_segmenter(
        x_guard, params["w1_gemm"], params["b1_col"], params["w2_col"],
        params["b2_s"], C=C, Cm=Cm, H=H, W=W)

    # Outputs come back in the padded-flat layout; crop the interior.
    prob = prob_flat.reshape(B, H + 2, Wp)[:, 1:H + 1, 1:W + 1][:, None, :, :]
    mask = mask_flat.reshape(B, H + 2, Wp)[:, 1:H + 1, 1:W + 1][:, None, :, :]
    return prob, mask                       # f32 [B,1,H,W], int8 [B,1,H,W]


def _reference_forward(params, x_V):
    """Pure-JAX f32 reference (no Pallas) for correctness checking."""
    h = jax.lax.conv_general_dilated(
        x_V, params["w1_oihw"], window_strides=(1, 1), padding="SAME",
        dimension_numbers=("NCHW", "OIHW", "NCHW"))
    h = jnp.maximum(h + params["b1_vec"].reshape(1, -1, 1, 1), 0.0)
    logits = (jnp.sum(h * params["w2_oihw"].reshape(1, -1, 1, 1),
                      axis=1, keepdims=True)
              + params["b2_vec"].reshape(1, 1, 1, 1))
    return jax.nn.sigmoid(logits)


def soft_dice_loss(pred, target, eps=1e-6):
    # Stand-in for the injected `loss_seg` module.
    num = 2.0 * jnp.sum(pred * target, axis=(1, 2, 3)) + eps
    den = jnp.sum(pred, axis=(1, 2, 3)) + jnp.sum(target, axis=(1, 2, 3)) + eps
    return 1.0 - num / den


def segmentation_model_forward(params, x_V, x_M):
    """
    Mirrors segmentation_model.forward (inference path, optimizer=None):
      visible['x_VM'] = segmenter(x_V)
      mask_indices    = indices i where x_M[i] is not None
      outputs: x_M (packed masks), x_A (x_V[mask_indices]),
               x_AM ((x_VM[mask_indices] > 0.5) * 1)
    """
    x_VM, hard_mask_i8 = segmenter_forward(params, x_V)

    mask_indices = [i for i, m in enumerate(x_M) if m is not None]
    idx = jnp.asarray(mask_indices, dtype=jnp.int32)

    mask_VM_packed = jnp.stack([x_M[i] for i in mask_indices], axis=0)
    x_AM_packed = x_VM[idx]
    # Matches original: loss_seg is computed but only consumed when an
    # optimizer is provided (training); kept here for parity, unused.
    _loss_seg = soft_dice_loss(x_AM_packed, mask_VM_packed)

    # Cast the hard mask only AFTER the gather (PyTorch (x>0.5)*1 is int64;
    # int32 is the JAX-friendly analog).  Keeping int8 up to here preserves
    # the kernel's 4x output-byte saving.
    mask_AM_packed = hard_mask_i8[idx].astype(jnp.int32)

    outputs = OrderedDict()
    outputs["x_M"] = mask_VM_packed
    outputs["x_A"] = x_V[idx]
    outputs["x_AM"] = mask_AM_packed
    return outputs


# TODO(synk): the optimizer/backward branch of segmentation_model.forward
# (clear_grad / loss.backward / optimizer.step) is training-only PyTorch
# machinery with no Pallas forward-kernel equivalent; only inference is done.

if __name__ == "__main__":
    key = jax.random.PRNGKey(0)
    k_params, k_x, k_m = jax.random.split(key, 3)

    B, C, H, W = 2, 4, 16, 16
    C_MID = 8

    params = init_segmenter_params(k_params, C, C_MID)
    x_V = jax.random.normal(k_x, (B, C, H, W), jnp.float32)
    # Synthetic binary masks for every batch element (all "not None").
    x_M_arr = (jax.random.uniform(k_m, (B, 1, H, W)) > 0.5).astype(jnp.float32)
    x_M = [x_M_arr[i] for i in range(B)]

    outputs = segmentation_model_forward(params, x_V, x_M)
    jax.block_until_ready(outputs["x_AM"])
    jax.block_until_ready(outputs["x_A"])
    jax.block_until_ready(outputs["x_M"])

    # Correctness check against a pure-JAX f32 reference (kernel streams bf16
    # inputs => small tolerance on probabilities).
    x_VM, hard_i8 = segmenter_forward(params, x_V)
    x_VM_ref = _reference_forward(params, x_V)
    jax.block_until_ready(x_VM)
    assert jnp.allclose(x_VM, x_VM_ref, atol=1e-2, rtol=1e-2), "prob mismatch"
    hard_ref = x_VM_ref > 0.5
    decisive = jnp.abs(x_VM_ref - 0.5) > 1e-2   # ignore pixels right at 0.5
    assert bool(jnp.all(jnp.where(decisive, (hard_i8 > 0) == hard_ref, True))), \
        "hard-mask mismatch"

    assert outputs["x_AM"].shape == (B, 1, H, W)
    assert outputs["x_AM"].dtype == jnp.int32
    assert outputs["x_A"].shape == (B, C, H, W)
    assert outputs["x_M"].shape == (B, 1, H, W)
    print("KERNEL_OK")
</pallas_src>

<mosaic_0001>
module attributes {stable_mosaic.version = 11 : i64} {
  func.func @kernel(%arg0: i32, %arg1: memref<1x4x362xbf16, #tpu.memory_space<vmem>>, %arg2: memref<8x36xbf16, #tpu.memory_space<vmem>>, %arg3: memref<8x1xf32, #tpu.memory_space<vmem>>, %arg4: memref<8x1xf32, #tpu.memory_space<vmem>>, %arg5: memref<1xf32, #tpu.memory_space<smem>>, %arg6: memref<1x1x324xf32, #tpu.memory_space<vmem>>, %arg7: memref<1x1x324xi8, #tpu.memory_space<vmem>>) attributes {dimension_semantics = [#tpu.dimension_semantics<parallel>], iteration_bounds = array<i64: 2>, scalar_prefetch = 0 : i64, scratch_operands = 0 : i64, tpu.core_type = #tpu.core_type<tc>, window_params = [{transform_indices = @transform_0, window_bounds = array<i64: 1, 4, 362>}, {pipeline_mode = #tpu.pipeline_mode<synchronous>, transform_indices = @transform_1, window_bounds = array<i64: 8, 36>}, {pipeline_mode = #tpu.pipeline_mode<synchronous>, transform_indices = @transform_2, window_bounds = array<i64: 8, 1>}, {pipeline_mode = #tpu.pipeline_mode<synchronous>, transform_indices = @transform_3, window_bounds = array<i64: 8, 1>}, {transform_indices = @transform_4, window_bounds = array<i64: 1>}, {transform_indices = @transform_5, window_bounds = array<i64: 1, 1, 324>}, {transform_indices = @transform_6, window_bounds = array<i64: 1, 1, 324>}]} {
    %c0 = arith.constant 0 : index
    %c0_0 = arith.constant 0 : index
    %c0_1 = arith.constant 0 : index
    %0 = vector.load %arg1[%c0, %c0_0, %c0_1] : memref<1x4x362xbf16, #tpu.memory_space<vmem>>, vector<1x4x324xbf16>
    %1 = vector.shape_cast %0 : vector<1x4x324xbf16> to vector<4x324xbf16>
    %c0_2 = arith.constant 0 : index
    %c0_3 = arith.constant 0 : index
    %2 = vector.load %arg2[%c0_2, %c0_3] : memref<8x36xbf16, #tpu.memory_space<vmem>>, vector<8x4xbf16>
    %cst = arith.constant dense<0.000000e+00> : vector<8x324xf32>
    %3 = tpu.matmul %2, %1, %cst {dimension_numbers = #tpu.dot_dimension_numbers<[1], [0], [0], [1], [0, 0, 1, 1], [], []>} : vector<8x4xbf16>, vector<4x324xbf16>, vector<8x324xf32> -> vector<8x324xf32>
    %c0_4 = arith.constant 0 : index
    %c0_5 = arith.constant 0 : index
    %c1 = arith.constant 1 : index
    %4 = vector.load %arg1[%c0_4, %c0_5, %c1] : memref<1x4x362xbf16, #tpu.memory_space<vmem>>, vector<1x4x324xbf16>
    %5 = vector.shape_cast %4 : vector<1x4x324xbf16> to vector<4x324xbf16>
    %c0_6 = arith.constant 0 : index
    %c4 = arith.constant 4 : index
    %6 = vector.load %arg2[%c0_6, %c4] : memref<8x36xbf16, #tpu.memory_space<vmem>>, vector<8x4xbf16>
    %cst_7 = arith.constant dense<0.000000e+00> : vector<8x324xf32>
    %7 = tpu.matmul %6, %5, %cst_7 {dimension_numbers = #tpu.dot_dimension_numbers<[1], [0], [0], [1], [0, 0, 1, 1], [], []>} : vector<8x4xbf16>, vector<4x324xbf16>, vector<8x324xf32> -> vector<8x324xf32>
    %8 = arith.addf %3, %7 : vector<8x324xf32>
    %c0_8 = arith.constant 0 : index
    %c0_9 = arith.constant 0 : index
    %c2 = arith.constant 2 : index
    %9 = vector.load %arg1[%c0_8, %c0_9, %c2] : memref<1x4x362xbf16, #tpu.memory_space<vmem>>, vector<1x4x324xbf16>
    %10 = vector.shape_cast %9 : vector<1x4x324xbf16> to vector<4x324xbf16>
    %c0_10 = arith.constant 0 : index
    %c8 = arith.constant 8 : index
    %11 = vector.load %arg2[%c0_10, %c8] : memref<8x36xbf16, #tpu.memory_space<vmem>>, vector<8x4xbf16>
    %cst_11 = arith.constant dense<0.000000e+00> : vector<8x324xf32>
    %12 = tpu.matmul %11, %10, %cst_11 {dimension_numbers = #tpu.dot_dimension_numbers<[1], [0], [0], [1], [0, 0, 1, 1], [], []>} : vector<8x4xbf16>, vector<4x324xbf16>, vector<8x324xf32> -> vector<8x324xf32>
    %13 = arith.addf %8, %12 : vector<8x324xf32>
    %c0_12 = arith.constant 0 : index
    %c0_13 = arith.constant 0 : index
    %c18 = arith.constant 18 : index
    %14 = vector.load %arg1[%c0_12, %c0_13, %c18] : memref<1x4x362xbf16, #tpu.memory_space<vmem>>, vector<1x4x324xbf16>
    %15 = vector.shape_cast %14 : vector<1x4x324xbf16> to vector<4x324xbf16>
    %c0_14 = arith.constant 0 : index
    %c12 = arith.constant 12 : index
    %16 = vector.load %arg2[%c0_14, %c12] : memref<8x36xbf16, #tpu.memory_space<vmem>>, vector<8x4xbf16>
    %cst_15 = arith.constant dense<0.000000e+00> : vector<8x324xf32>
    %17 = tpu.matmul %16, %15, %cst_15 {dimension_numbers = #tpu.dot_dimension_numbers<[1], [0], [0], [1], [0, 0, 1, 1], [], []>} : vector<8x4xbf16>, vector<4x324xbf16>, vector<8x324xf32> -> vector<8x324xf32>
    %18 = arith.addf %13, %17 : vector<8x324xf32>
    %c0_16 = arith.constant 0 : index
    %c0_17 = arith.constant 0 : index
    %c19 = arith.constant 19 : index
    %19 = vector.load %arg1[%c0_16, %c0_17, %c19] : memref<1x4x362xbf16, #tpu.memory_space<vmem>>, vector<1x4x324xbf16>
    %20 = vector.shape_cast %19 : vector<1x4x324xbf16> to vector<4x324xbf16>
    %c0_18 = arith.constant 0 : index
    %c16 = arith.constant 16 : index
    %21 = vector.load %arg2[%c0_18, %c16] : memref<8x36xbf16, #tpu.memory_space<vmem>>, vector<8x4xbf16>
    %cst_19 = arith.constant dense<0.000000e+00> : vector<8x324xf32>
    %22 = tpu.matmul %21, %20, %cst_19 {dimension_numbers = #tpu.dot_dimension_numbers<[1], [0], [0], [1], [0, 0, 1, 1], [], []>} : vector<8x4xbf16>, vector<4x324xbf16>, vector<8x324xf32> -> vector<8x324xf32>
    %23 = arith.addf %18, %22 : vector<8x324xf32>
    %c0_20 = arith.constant 0 : index
    %c0_21 = arith.constant 0 : index
    %c20 = arith.constant 20 : index
    %24 = vector.load %arg1[%c0_20, %c0_21, %c20] : memref<1x4x362xbf16, #tpu.memory_space<vmem>>, vector<1x4x324xbf16>
    %25 = vector.shape_cast %24 : vector<1x4x324xbf16> to vector<4x324xbf16>
    %c0_22 = arith.constant 0 : index
    %c20_23 = arith.constant 20 : index
    %26 = vector.load %arg2[%c0_22, %c20_23] : memref<8x36xbf16, #tpu.memory_space<vmem>>, vector<8x4xbf16>
    %cst_24 = arith.constant dense<0.000000e+00> : vector<8x324xf32>
    %27 = tpu.matmul %26, %25, %cst_24 {dimension_numbers = #tpu.dot_dimension_numbers<[1], [0], [0], [1], [0, 0, 1, 1], [], []>} : vector<8x4xbf16>, vector<4x324xbf16>, vector<8x324xf32> -> vector<8x324xf32>
    %28 = arith.addf %23, %27 : vector<8x324xf32>
    %c0_25 = arith.constant 0 : index
    %c0_26 = arith.constant 0 : index
    %c36 = arith.constant 36 : index
    %29 = vector.load %arg1[%c0_25, %c0_26, %c36] : memref<1x4x362xbf16, #tpu.memory_space<vmem>>, vector<1x4x324xbf16>
    %30 = vector.shape_cast %29 : vector<1x4x324xbf16> to vector<4x324xbf16>
    %c0_27 = arith.constant 0 : index
    %c24 = arith.constant 24 : index
    %31 = vector.load %arg2[%c0_27, %c24] : memref<8x36xbf16, #tpu.memory_space<vmem>>, vector<8x4xbf16>
    %cst_28 = arith.constant dense<0.000000e+00> : vector<8x324xf32>
    %32 = tpu.matmul %31, %30, %cst_28 {dimension_numbers = #tpu.dot_dimension_numbers<[1], [0], [0], [1], [0, 0, 1, 1], [], []>} : vector<8x4xbf16>, vector<4x324xbf16>, vector<8x324xf32> -> vector<8x324xf32>
    %33 = arith.addf %28, %32 : vector<8x324xf32>
    %c0_29 = arith.constant 0 : index
    %c0_30 = arith.constant 0 : index
    %c37 = arith.constant 37 : index
    %34 = vector.load %arg1[%c0_29, %c0_30, %c37] : memref<1x4x362xbf16, #tpu.memory_space<vmem>>, vector<1x4x324xbf16>
    %35 = vector.shape_cast %34 : vector<1x4x324xbf16> to vector<4x324xbf16>
    %c0_31 = arith.constant 0 : index
    %c28 = arith.constant 28 : index
    %36 = vector.load %arg2[%c0_31, %c28] : memref<8x36xbf16, #tpu.memory_space<vmem>>, vector<8x4xbf16>
    %cst_32 = arith.constant dense<0.000000e+00> : vector<8x324xf32>
    %37 = tpu.matmul %36, %35, %cst_32 {dimension_numbers = #tpu.dot_dimension_numbers<[1], [0], [0], [1], [0, 0, 1, 1], [], []>} : vector<8x4xbf16>, vector<4x324xbf16>, vector<8x324xf32> -> vector<8x324xf32>
    %38 = arith.addf %33, %37 : vector<8x324xf32>
    %c0_33 = arith.constant 0 : index
    %c0_34 = arith.constant 0 : index
    %c38 = arith.constant 38 : index
    %39 = vector.load %arg1[%c0_33, %c0_34, %c38] : memref<1x4x362xbf16, #tpu.memory_space<vmem>>, vector<1x4x324xbf16>
    %40 = vector.shape_cast %39 : vector<1x4x324xbf16> to vector<4x324xbf16>
    %c0_35 = arith.constant 0 : index
    %c32 = arith.constant 32 : index
    %41 = vector.load %arg2[%c0_35, %c32] : memref<8x36xbf16, #tpu.memory_space<vmem>>, vector<8x4xbf16>
    %cst_36 = arith.constant dense<0.000000e+00> : vector<8x324xf32>
    %42 = tpu.matmul %41, %40, %cst_36 {dimension_numbers = #tpu.dot_dimension_numbers<[1], [0], [0], [1], [0, 0, 1, 1], [], []>} : vector<8x4xbf16>, vector<4x324xbf16>, vector<8x324xf32> -> vector<8x324xf32>
    %43 = arith.addf %38, %42 : vector<8x324xf32>
    %c0_37 = arith.constant 0 : index
    %c0_38 = arith.constant 0 : index
    %44 = vector.load %arg3[%c0_37, %c0_38] : memref<8x1xf32, #tpu.memory_space<vmem>>, vector<8x1xf32>
    %45 = vector.broadcast %44 : vector<8x1xf32> to vector<8x324xf32>
    %46 = arith.addf %43, %45 : vector<8x324xf32>
    %cst_39 = arith.constant 0.000000e+00 : f32
    %47 = vector.broadcast %cst_39 : f32 to vector<8x324xf32>
    %48 = arith.maximumf %46, %47 : vector<8x324xf32>
    %c0_40 = arith.constant 0 : index
    %c0_41 = arith.constant 0 : index
    %49 = vector.load %arg4[%c0_40, %c0_41] : memref<8x1xf32, #tpu.memory_space<vmem>>, vector<8x1xf32>
    %50 = vector.broadcast %49 : vector<8x1xf32> to vector<8x324xf32>
    %51 = arith.mulf %48, %50 : vector<8x324xf32>
    %cst_42 = arith.constant dense<0.000000e+00> : vector<324xf32>
    %52 = vector.multi_reduction <add>, %51, %cst_42 [0] : vector<8x324xf32> to vector<324xf32>
    %53 = vector.shape_cast %52 : vector<324xf32> to vector<1x324xf32>
    %c0_43 = arith.constant 0 : index
    %54 = memref.load %arg5[%c0_43] : memref<1xf32, #tpu.memory_space<smem>>
    %55 = vector.broadcast %54 : f32 to vector<1x324xf32>
    %56 = arith.addf %53, %55 : vector<1x324xf32>
    %cst_44 = arith.constant 0.000000e+00 : f32
    %57 = vector.broadcast %cst_44 : f32 to vector<1x324xf32>
    %58 = arith.subf %57, %56 : vector<1x324xf32>
    %59 = math.exp %58 : vector<1x324xf32>
    %cst_45 = arith.constant 1.000000e+00 : f32
    %60 = vector.broadcast %cst_45 : f32 to vector<1x324xf32>
    %61 = arith.addf %60, %59 : vector<1x324xf32>
    %cst_46 = arith.constant 1.000000e+00 : f32
    %62 = vector.broadcast %cst_46 : f32 to vector<1x324xf32>
    %63 = arith.divf %62, %61 : vector<1x324xf32>
    %c0_47 = arith.constant 0 : index
    %c0_48 = arith.constant 0 : index
    %c0_49 = arith.constant 0 : index
    %64 = vector.load %arg6[%c0_47, %c0_48, %c0_49] : memref<1x1x324xf32, #tpu.memory_space<vmem>>, vector<1x1x324xf32>
    %65 = vector.shape_cast %64 : vector<1x1x324xf32> to vector<1x324xf32>
    %66 = vector.shape_cast %63 : vector<1x324xf32> to vector<1x1x324xf32>
    tpu.vector_store %arg6[%c0_47, %c0_48, %c0_49], %66 {strides = array<i32>} : memref<1x1x324xf32, #tpu.memory_space<vmem>>, vector<1x1x324xf32>,
    %cst_50 = arith.constant 0.000000e+00 : f32
    %67 = vector.broadcast %cst_50 : f32 to vector<1x324xf32>
    %68 = arith.cmpf ogt, %56, %67 : vector<1x324xf32>
    %69 = arith.extui %68 : vector<1x324xi1> to vector<1x324xi8>
    %c0_51 = arith.constant 0 : index
    %c0_52 = arith.constant 0 : index
    %c0_53 = arith.constant 0 : index
    %70 = vector.load %arg7[%c0_51, %c0_52, %c0_53] : memref<1x1x324xi8, #tpu.memory_space<vmem>>, vector<1x1x324xi8>
    %71 = vector.shape_cast %70 : vector<1x1x324xi8> to vector<1x324xi8>
    %72 = vector.shape_cast %69 : vector<1x324xi8> to vector<1x1x324xi8>
    tpu.vector_store %arg7[%c0_51, %c0_52, %c0_53], %72 {strides = array<i32>} : memref<1x1x324xi8, #tpu.memory_space<vmem>>, vector<1x1x324xi8>,
    return
  }
  func.func @transform_0(%arg0: i32) -> (i32, i32, i32) {
    %c0_i32 = arith.constant 0 : i32
    %c0_i32_0 = arith.constant 0 : i32
    %c0_i32_1 = arith.constant 0 : i32
    return %arg0, %c0_i32, %c0_i32_0 : i32, i32, i32
  }
  func.func @transform_1(%arg0: i32) -> (i32, i32) {
    %c0_i32 = arith.constant 0 : i32
    %c0_i32_0 = arith.constant 0 : i32
    %c0_i32_1 = arith.constant 0 : i32
    return %c0_i32, %c0_i32_0 : i32, i32
  }
  func.func @transform_2(%arg0: i32) -> (i32, i32) {
    %c0_i32 = arith.constant 0 : i32
    %c0_i32_0 = arith.constant 0 : i32
    %c0_i32_1 = arith.constant 0 : i32
    return %c0_i32, %c0_i32_0 : i32, i32
  }
  func.func @transform_3(%arg0: i32) -> (i32, i32) {
    %c0_i32 = arith.constant 0 : i32
    %c0_i32_0 = arith.constant 0 : i32
    %c0_i32_1 = arith.constant 0 : i32
    return %c0_i32, %c0_i32_0 : i32, i32
  }
  func.func @transform_4(%arg0: i32) -> i32 {
    %c0_i32 = arith.constant 0 : i32
    %c0_i32_0 = arith.constant 0 : i32
    return %c0_i32 : i32
  }
  func.func @transform_5(%arg0: i32) -> (i32, i32, i32) {
    %c0_i32 = arith.constant 0 : i32
    %c0_i32_0 = arith.constant 0 : i32
    %c0_i32_1 = arith.constant 0 : i32
    return %arg0, %c0_i32, %c0_i32_0 : i32, i32, i32
  }
  func.func @transform_6(%arg0: i32) -> (i32, i32, i32) {
    %c0_i32 = arith.constant 0 : i32
    %c0_i32_0 = arith.constant 0 : i32
    %c0_i32_1 = arith.constant 0 : i32
    return %arg0, %c0_i32, %c0_i32_0 : i32, i32, i32
  }
}

</mosaic_0001>

<llo_original>
// kernel: tpu_custom_call.1
$region0: #{tpu_custom_call.1}
  #allocation0 [shape = 'u32[]', space=smem, size = 0x4, offset = 0x4, fixed_abs, tag = 'smem constant byte address 0x4 - core index']
  #allocation1 [shape = 'u32[144,128]{1,0:T(1,128)}', space=vmem, size = 0x12000, scoped, tag = 'internal scratch']
  #allocation2 [shape = 'f32[1]{0:T(128)S(6)}', space=smem, size = 0x200, scoped, tag = 'scoped memory for tpu_custom_call.1']
  %s0 = inlined_call_operand.vmem [shape: bf16[2,4,362], index: 0, kind: input, shape index: {}]
  %s1 = inlined_call_operand.vmem [shape: bf16[8,36], index: 1, kind: input, shape index: {}]
  %s2 = inlined_call_operand.vmem [shape: f32[8,1], index: 2, kind: input, shape index: {}]
  %s3 = inlined_call_operand.vmem [shape: f32[8,1], index: 3, kind: input, shape index: {}]
  %s4 = inlined_call_operand.<no memory space> [shape: f32[1], index: 4, kind: input, shape index: {}]
  %s5 = inlined_call_operand.hbm [shape: f32[2,1,324], index: 5, kind: output, shape index: {0}]
  %s6 = inlined_call_operand.vmem [shape: s8[2,1,324], index: 6, kind: output, shape index: {1}]
  %7 = xla_tuple %s5, %s6
  %s8 = sld [smem:[#allocation0]]
  $region61: #{tpu_custom_call.1} parent=0
    _
  %s10 = ssub.s32 1, %s8
  %s11 = scalar_select 0, %s10, %s8
  %12 = sst [smem:[#allocation2]] %s4
  $region1: #{tpu_custom_call.1} parent=0
    #allocation3 [shape = 'u8[3072]{0}', space=vmem, size = 0xc00, scoped, tag = 'output window, operand 0']
    #allocation4 [shape = 's32[2]{0}', space=sflag, size = 0x8, scoped, tag = 'scoped memory for tpu_custom_call.1']
    %13 = vsyncpa [#allocation4], 0
    %s14 = scalar_lea.sflag [#allocation4], 1
    %15 = vsyncpa %s14, 0
    loop: start=0, step=1, limit=4
    $region2: #{tpu_custom_call.1} parent=1 // loop_pre_header
      _
    $region3: #{tpu_custom_call.1} parent=1 // loop_header
      %s17 = sphi 0, %s21
      %p18 = scmp.ge.s32.totalorder %s17, 4
      %s27 = sphi 0, %s29
      %s30 = sphi 0, %s27
      %s31 = sphi 0, %s30
      %s47 = sphi 0, %s31
      %s51 = sphi 0, %s51
      %s53 = sphi 0, %s51
      %s54 = sphi 0, %s53
      %s68 = sphi 0, %s54
      %s72 = sphi 0, %s72
      %s74 = sphi 0, %s72
      %s75 = sphi 0, %s74
      %s89 = sphi 0, %s75
      %s93 = sphi 0, %s93
      %s95 = sphi 0, %s93
      %s96 = sphi 0, %s95
      %s110 = sphi 0, %s96
      %s114 = sphi 0, %s114
      %s116 = sphi 0, %s114
      %s117 = sphi 0, %s116
      %s131 = sphi 0, %s117
      %s137 = sphi 0, %s139
      %s140 = sphi 0, %s137
      %s141 = sphi 0, %s140
      %s157 = sphi 0, %s141
      %s163 = sphi 0, %s165
      %s166 = sphi 0, %s163
      %s167 = sphi 0, %s166
      %s183 = sphi 0, %s167
    $region4: #{tpu_custom_call.1} parent=1 // loop_header_branch
      %20 = sbr.rel (%p18) target = $region8
    $region5: #{tpu_custom_call.1} parent=1 // loop_body
      %s22 = ssub.s32 %s17, 1
      %s23 = ssub.s32 %s17, 2
      %s24 = sadd.s32 %s17, 1
      %s25 = ssub.s32 %s17, %s24
      %p26 = scmp.eq.s32.totalorder %s25, 0
      %s28 = sadd.s32 %s27, 1
      %s29 = scalar_select %p26, %s27, %s28
      %p32 = pneg %p26
      %p33 = scmp.eq.s32.totalorder %s17, 1
      %p34 = por %p32, %p33
      %p35 = scmp.ne.s32.totalorder %s27, %s30
      %p36 = scmp.eq.s32.totalorder %s17, 0
      %p37 = por %p35, %p36
      %p38 = scmp.ne.s32.totalorder %s27, %s30
      %p39 = scmp.eq.s32.totalorder %s22, 1
      %p40 = por %p38, %p39
      %p41 = scmp.ne.s32.totalorder %s30, %s31
      %p42 = scmp.eq.s32.totalorder %s22, 0
      %p43 = por %p41, %p42
      %p44 = scmp.ne.s32.totalorder %s30, %s31
      %p45 = scmp.eq.s32.totalorder %s23, 1
      %p46 = por %p44, %p45
      %p48 = scmp.ne.s32.totalorder %s31, %s47
      %p49 = scmp.eq.s32.totalorder %s23, 0
      %p50 = por %p48, %p49
      %s52 = sadd.s32 %s51, 1
      %p55 = scmp.eq.s32.totalorder %s17, 1
      %p56 = scmp.ne.s32.totalorder %s51, %s53
      %p57 = scmp.eq.s32.totalorder %s17, 0
      %p58 = por %p56, %p57
      %p59 = scmp.ne.s32.totalorder %s51, %s53
      %p60 = scmp.eq.s32.totalorder %s22, 1
      %p61 = por %p59, %p60
      %p62 = scmp.ne.s32.totalorder %s53, %s54
      %p63 = scmp.eq.s32.totalorder %s22, 0
      %p64 = por %p62, %p63
      %p65 = scmp.ne.s32.totalorder %s53, %s54
      %p66 = scmp.eq.s32.totalorder %s23, 1
      %p67 = por %p65, %p66
      %p69 = scmp.ne.s32.totalorder %s54, %s68
      %p70 = scmp.eq.s32.totalorder %s23, 0
      %p71 = por %p69, %p70
      %s73 = sadd.s32 %s72, 1
      %p76 = scmp.eq.s32.totalorder %s17, 1
      %p77 = scmp.ne.s32.totalorder %s72, %s74
      %p78 = scmp.eq.s32.totalorder %s17, 0
      %p79 = por %p77, %p78
      %p80 = scmp.ne.s32.totalorder %s72, %s74
      %p81 = scmp.eq.s32.totalorder %s22, 1
      %p82 = por %p80, %p81
      %p83 = scmp.ne.s32.totalorder %s74, %s75
      %p84 = scmp.eq.s32.totalorder %s22, 0
      %p85 = por %p83, %p84
      %p86 = scmp.ne.s32.totalorder %s74, %s75
      %p87 = scmp.eq.s32.totalorder %s23, 1
      %p88 = por %p86, %p87
      %p90 = scmp.ne.s32.totalorder %s75, %s89
      %p91 = scmp.eq.s32.totalorder %s23, 0
      %p92 = por %p90, %p91
      %s94 = sadd.s32 %s93, 1
      %p97 = scmp.eq.s32.totalorder %s17, 1
      %p98 = scmp.ne.s32.totalorder %s93, %s95
      %p99 = scmp.eq.s32.totalorder %s17, 0
      %p100 = por %p98, %p99
      %p101 = scmp.ne.s32.totalorder %s93, %s95
      %p102 = scmp.eq.s32.totalorder %s22, 1
      %p103 = por %p101, %p102
      %p104 = scmp.ne.s32.totalorder %s95, %s96
      %p105 = scmp.eq.s32.totalorder %s22, 0
      %p106 = por %p104, %p105
      %p107 = scmp.ne.s32.totalorder %s95, %s96
      %p108 = scmp.eq.s32.totalorder %s23, 1
      %p109 = por %p107, %p108
      %p111 = scmp.ne.s32.totalorder %s96, %s110
      %p112 = scmp.eq.s32.totalorder %s23, 0
      %p113 = por %p111, %p112
      %s115 = sadd.s32 %s114, 1
      %p118 = scmp.eq.s32.totalorder %s17, 1
      %p119 = scmp.ne.s32.totalorder %s114, %s116
      %p120 = scmp.eq.s32.totalorder %s17, 0
      %p121 = por %p119, %p120
      %p122 = scmp.ne.s32.totalorder %s114, %s116
      %p123 = scmp.eq.s32.totalorder %s22, 1
      %p124 = por %p122, %p123
      %p125 = scmp.ne.s32.totalorder %s116, %s117
      %p126 = scmp.eq.s32.totalorder %s22, 0
      %p127 = por %p125, %p126
      %p128 = scmp.ne.s32.totalorder %s116, %s117
      %p129 = scmp.eq.s32.totalorder %s23, 1
      %p130 = por %p128, %p129
      %p132 = scmp.ne.s32.totalorder %s117, %s131
      %p133 = scmp.eq.s32.totalorder %s23, 0
      %p134 = por %p132, %p133
      %s135 = ssub.s32 %s17, %s24
      %p136 = scmp.eq.s32.totalorder %s135, 0
      %s138 = sadd.s32 %s137, 1
      %s139 = scalar_select %p136, %s137, %s138
      %p142 = pneg %p136
      %p143 = scmp.eq.s32.totalorder %s17, 1
      %p144 = por %p142, %p143
      %p145 = scmp.ne.s32.totalorder %s137, %s140
      %p146 = scmp.eq.s32.totalorder %s17, 0
      %p147 = por %p145, %p146
      %p148 = scmp.ne.s32.totalorder %s137, %s140
      %p149 = scmp.eq.s32.totalorder %s22, 1
      %p150 = por %p148, %p149
      %p151 = scmp.ne.s32.totalorder %s140, %s141
      %p152 = scmp.eq.s32.totalorder %s22, 0
      %p153 = por %p151, %p152
      %p154 = scmp.ne.s32.totalorder %s140, %s141
      %p155 = scmp.eq.s32.totalorder %s23, 1
      %p156 = por %p154, %p155
      %p158 = scmp.ne.s32.totalorder %s141, %s157
      %p159 = scmp.eq.s32.totalorder %s23, 0
      %p160 = por %p158, %p159
      %s161 = ssub.s32 %s17, %s24
      %p162 = scmp.eq.s32.totalorder %s161, 0
      %s164 = sadd.s32 %s163, 1
      %s165 = scalar_select %p162, %s163, %s164
      %p168 = pneg %p162
      %p169 = scmp.eq.s32.totalorder %s17, 1
      %p170 = por %p168, %p169
      %p171 = scmp.ne.s32.totalorder %s163, %s166
      %p172 = scmp.eq.s32.totalorder %s17, 0
      %p173 = por %p171, %p172
      %p174 = scmp.ne.s32.totalorder %s163, %s166
      %p175 = scmp.eq.s32.totalorder %s22, 1
      %p176 = por %p174, %p175
      %p177 = scmp.ne.s32.totalorder %s166, %s167
      %p178 = scmp.eq.s32.totalorder %s22, 0
      %p179 = por %p177, %p178
      %p180 = scmp.ne.s32.totalorder %s166, %s167
      %p181 = scmp.eq.s32.totalorder %s23, 1
      %p182 = por %p180, %p181
      %p184 = scmp.ne.s32.totalorder %s167, %s183
      %p185 = scmp.eq.s32.totalorder %s23, 0
      %p186 = por %p184, %p185
      %p187 = scmp.le.s32.totalorder 1, %s17
      %p188 = scmp.lt.s32.totalorder %s17, 3
      %p189 = pnand %p187, %p188
      %p190 = pneg %p189
      // Predicated region
      $region9: #{tpu_custom_call.1} parent=5 // pred_check
        _
      $region10: #{tpu_custom_call.1} parent=5 // pred_check_branch
        %192 = sbr.rel (%p189) target = $region12
      $region11: #{tpu_custom_call.1} parent=5 // pred_region
        %s193 = ssub.s32 %s17, 1
        // Predicated region
        $region13: #{tpu_custom_call.1} parent=11 // pred_check
          %p194 = pneg %p64
        $region14: #{tpu_custom_call.1} parent=11 // pred_check_branch
          %196 = sbr.rel (%p194) target = $region16
        $region15: #{tpu_custom_call.1} parent=11 // pred_region
          _
        $region16: #{tpu_custom_call.1} parent=11 // pred_fallthru
          _
        // Predicated region
        $region17: #{tpu_custom_call.1} parent=11 // pred_check
          %p197 = pneg %p85
        $region18: #{tpu_custom_call.1} parent=11 // pred_check_branch
          %199 = sbr.rel (%p197) target = $region20
        $region19: #{tpu_custom_call.1} parent=11 // pred_region
          _
        $region20: #{tpu_custom_call.1} parent=11 // pred_fallthru
          _
        // Predicated region
        $region21: #{tpu_custom_call.1} parent=11 // pred_check
          %p200 = pneg %p106
        $region22: #{tpu_custom_call.1} parent=11 // pred_check_branch
          %202 = sbr.rel (%p200) target = $region24
        $region23: #{tpu_custom_call.1} parent=11 // pred_region
          _
        $region24: #{tpu_custom_call.1} parent=11 // pred_fallthru
          _
        // Predicated region
        $region25: #{tpu_custom_call.1} parent=11 // pred_check
          %p203 = pneg %p127
        $region26: #{tpu_custom_call.1} parent=11 // pred_check_branch
          %205 = sbr.rel (%p203) target = $region28
        $region27: #{tpu_custom_call.1} parent=11 // pred_region
          _
        $region28: #{tpu_custom_call.1} parent=11 // pred_fallthru
          _
      $region12: #{tpu_custom_call.1} parent=5 // pred_fallthru
        _
      %p206 = scmp.lt.s32.totalorder %s17, 2
      // Predicated region
      $region29: #{tpu_custom_call.1} parent=5 // pred_check
        %p207 = pneg %p206
      $region30: #{tpu_custom_call.1} parent=5 // pred_check_branch
        %209 = sbr.rel (%p207) target = $region32
      $region31: #{tpu_custom_call.1} parent=5 // pred_region
        // Predicated region
        $region33: #{tpu_custom_call.1} parent=31 // pred_check
          %p210 = pneg %p37
        $region34: #{tpu_custom_call.1} parent=31 // pred_check_branch
          %212 = sbr.rel (%p210) target = $region36
        $region35: #{tpu_custom_call.1} parent=31 // pred_region
          %p213 = scmp.lt.s32.totalorder %s17, 1
          %s214 = scalar_select %p213, %s17, 1
          %s215 = smul.addr %s214, 3
          %s216 = smul.addr %s215, 2
          %s217 = scalar_lea.vmem %s0, %s216
        $region36: #{tpu_custom_call.1} parent=31 // pred_fallthru
          _
      $region32: #{tpu_custom_call.1} parent=5 // pred_fallthru
        _
      %p218 = scmp.le.s32.totalorder 1, %s17
      %p219 = scmp.lt.s32.totalorder %s17, 3
      %p220 = pnand %p218, %p219
      %p221 = pneg %p220
      // Predicated region
      $region37: #{tpu_custom_call.1} parent=5 // pred_check
        _
      $region38: #{tpu_custom_call.1} parent=5 // pred_check_branch
        %223 = sbr.rel (%p220) target = $region40
      $region39: #{tpu_custom_call.1} parent=5 // pred_region
        %s224 = ssub.s32 %s17, 1
        %p225 = scmp.lt.s32.totalorder %s22, 1
        %s226 = scalar_select %p225, %s22, 1
        %s227 = smul.addr %s226, 3
        %s228 = smul.addr %s227, 2
        %s229 = scalar_lea.vmem %s0, %s228
        %p230 = pneg %p43
        %p231 = pneg %p40
        %p232 = pneg %p64
        %p233 = pneg %p61
        %p234 = pneg %p85
        %p235 = pneg %p82
        %p236 = pneg %p106
        %p237 = pneg %p103
        %p238 = pneg %p127
        %p239 = pneg %p124
        %p240 = pneg %p153
        %p241 = pneg %p150
        %s242 = sand.u32 %s140, 1
        %s243 = scalar_lea.sflag [#allocation4], %s242
        %s244 = sand.u32 %s140, 1
        %s245 = smul.addr %s244, 3
        %s246 = scalar_lea.vmem [#allocation3], %s245
        %p247 = pneg %p179
        %p248 = pneg %p176
        %p249 = scmp.lt.s32.totalorder %s22, 1
        %s250 = scalar_select %p249, %s22, 1
        %s251 = smul.addr %s250, 3
        %s252 = scalar_lea.vmem %s6, %s251
        %p253 = scmp.lt.s32.totalorder %s22, 1
        %s254 = scalar_select %p253, %s22, 1
        %s255 = smul.addr %s254, 3
        %s256 = smul.addr %s255, 2
        %s257 = scalar_lea.vmem %s0, %s256
        %p258 = scmp.lt.s32.totalorder %s22, 1
        %s259 = scalar_select %p258, %s22, 1
        %s260 = smul.addr %s259, 3
        %s261 = scalar_lea.vmem %s6, %s260
        %v265 = vld [vmem:[%s257] sm:$0x3f]
        %v266 = vld [vmem:[%s1] sm:$0xf]
        %v268 = vunpack.c.l.b16 %v266
        %v269 = vpack.c.b16 %v268, %v268
        %270 = vrot.lane.b32.xlu0 %v269, 124
        %v271 = vpop.permute.xlu0 %270
        %v273 = vcombine.high %v265, %v265
        %v275 = vunpack.c.l.s4 1983009808
        %v276 = vunpack.c.0.s8 %v275
        %v277 = vlaneseq
        %v278 = vshrl.u32 %v277, 7
        %v279 = vsub.s32 %v276, %v278
        %v280 = vrot.slane %v265, %v279
        %v282 = vunpack.c.l.s4 1983009808
        %v283 = vunpack.c.0.s8 %v282
        %v284 = vlaneseq
        %v285 = vshrl.u32 %v284, 7
        %v286 = vsub.s32 %v283, %v285
        %v287 = vrot.slane %v273, %v286
        %v288 = vcombine.high %v280, %v280
        %289 = vrot.lane.b32.xlu0 %v280, 127
        %v290 = vpop.permute.xlu0 %289
        %291 = vrot.lane.b32.xlu0 %v288, 127
        %v292 = vpop.permute.xlu0 %291
        %293 = vrot.lane.b32.xlu0 %v287, 127
        %v294 = vpop.permute.xlu0 %293
        %vm295 = vcmask 1039360
        %v296 = vsel %vm295, %v290, %v292
        %v297 = vsel %vm295, %v292, %v294
        %vm298 = vcmask 31744
        %v300 = vsel %vm298, %v271, 0
        %vm302 = vcmask 1041408
        %v304 = vsel %vm302, %v296, 0
        %v307 = vsel %vm302, %v297, 0
        %v310 = vsel %vm302, %v294, 0
        %312 = vmatprep.subr.bf16.mxu0 0
        %313 = vmatpush1.bf16.msra.mxu0 0
        %314 = vmatprep.subr.bf16.mxu0 0
        %315 = vmatpush1.bf16.msra.mxu0 0
        %316 = vmatprep.subr.bf16.mxu0 0
        %317 = vmatpush1.bf16.msra.mxu0 0
        %318 = vmatprep.subr.bf16.mxu0 0
        %319 = vmatpush1.bf16.msra.mxu0 0
        %320 = vmatprep.subr.bf16.mxu0 0
        %321 = vmatpush1.bf16.msra.mxu0 0
        %322 = vmatprep.subr.bf16.mxu0 0
        %323 = vmatpush1.bf16.msra.mxu0 0
        %324 = vmatprep.subr.bf16.mxu0 0
        %325 = vmatpush1.bf16.msra.mxu0 0
        %326 = vmatprep.subr.bf16.mxu0 %v307
        %327 = vmatpush1.bf16.msra.mxu0 %v304
        %328 = vmatprep.subr.bf16.mxu0 0
        %329 = vmatpush2.bf16.msra.mxu0 0
        %330 = vmatprep.subr.bf16.mxu0 0
        %331 = vmatpush2.bf16.msra.mxu0 0
        %332 = vmatprep.subr.bf16.mxu0 0
        %333 = vmatpush2.bf16.msra.mxu0 0
        %334 = vmatprep.subr.bf16.mxu0 0
        %335 = vmatpush2.bf16.msra.mxu0 0
        %336 = vmatprep.subr.bf16.mxu0 0
        %337 = vmatpush2.bf16.msra.mxu0 0
        %338 = vmatprep.subr.bf16.mxu0 0
        %339 = vmatpush2.bf16.msra.mxu0 0
        %340 = vmatprep.subr.bf16.mxu0 0
        %341 = vmatpush2.bf16.msra.mxu0 0
        %342 = vmatprep.subr.bf16.mxu0 0
        %343 = vmatpush2.bf16.msra.mxu0 0
        %344 = vmatprep.mubr.bf16.mxu0 0
        %345 = vmatmul.mubr.bf16.gmra.mxu0 %v300
        %v346 = vpop.f32.mrf.mxu0
        %v347 = vadd.f32 0.0, %v346
        %v348 = vpop.f32.mrf.mxu0
        %v349 = vadd.f32 0.0, %v348
        %v350 = vpop.f32.mrf.mxu0
        %v351 = vpop.f32.mrf.mxu0
        %352 = vdwg.mxu0
        %353 = vmatprep.subr.bf16.mxu0 0
        %354 = vmatpush1.bf16.msra.mxu0 0
        %355 = vmatprep.subr.bf16.mxu0 0
        %356 = vmatpush1.bf16.msra.mxu0 0
        %357 = vmatprep.subr.bf16.mxu0 0
        %358 = vmatpush1.bf16.msra.mxu0 0
        %359 = vmatprep.subr.bf16.mxu0 0
        %360 = vmatpush1.bf16.msra.mxu0 0
        %361 = vmatprep.subr.bf16.mxu0 0
        %362 = vmatpush1.bf16.msra.mxu0 0
        %363 = vmatprep.subr.bf16.mxu0 0
        %364 = vmatpush1.bf16.msra.mxu0 0
        %365 = vmatprep.subr.bf16.mxu0 0
        %366 = vmatpush1.bf16.msra.mxu0 0
        %367 = vmatprep.subr.bf16.mxu0 0
        %368 = vmatpush1.bf16.msra.mxu0 %v310
        %369 = vmatprep.subr.bf16.mxu0 0
        %370 = vmatpush2.bf16.msra.mxu0 0
        %371 = vmatprep.subr.bf16.mxu0 0
        %372 = vmatpush2.bf16.msra.mxu0 0
        %373 = vmatprep.subr.bf16.mxu0 0
        %374 = vmatpush2.bf16.msra.mxu0 0
        %375 = vmatprep.subr.bf16.mxu0 0
        %376 = vmatpush2.bf16.msra.mxu0 0
        %377 = vmatprep.subr.bf16.mxu0 0
        %378 = vmatpush2.bf16.msra.mxu0 0
        %379 = vmatprep.subr.bf16.mxu0 0
        %380 = vmatpush2.bf16.msra.mxu0 0
        %381 = vmatprep.subr.bf16.mxu0 0
        %382 = vmatpush2.bf16.msra.mxu0 0
        %383 = vmatprep.subr.bf16.mxu0 0
        %384 = vmatpush2.bf16.msra.mxu0 0
        %385 = vmatprep.mubr.bf16.mxu0 0
        %386 = vmatmul.mubr.bf16.gmra.mxu0 %v300
        %v387 = vpop.f32.mrf.mxu0
        %v388 = vadd.f32 0.0, %v387
        %v389 = vpop.f32.mrf.mxu0
        %v390 = vpop.f32.mrf.mxu0
        %v391 = vpop.f32.mrf.mxu0
        %392 = vdwg.mxu0
        %v394 = vsel %vm298, %v266, 0
        %v397 = vsel %vm302, %v280, 0
        %v400 = vsel %vm302, %v288, 0
        %v403 = vsel %vm302, %v287, 0
        %405 = vmatprep.subr.bf16.mxu0 0
        %406 = vmatpush1.bf16.msra.mxu0 0
        %407 = vmatprep.subr.bf16.mxu0 0
        %408 = vmatpush1.bf16.msra.mxu0 0
        %409 = vmatprep.subr.bf16.mxu0 0
        %410 = vmatpush1.bf16.msra.mxu0 0
        %411 = vmatprep.subr.bf16.mxu0 0
        %412 = vmatpush1.bf16.msra.mxu0 0
        %413 = vmatprep.subr.bf16.mxu0 0
        %414 = vmatpush1.bf16.msra.mxu0 0
        %415 = vmatprep.subr.bf16.mxu0 0
        %416 = vmatpush1.bf16.msra.mxu0 0
        %417 = vmatprep.subr.bf16.mxu0 0
        %418 = vmatpush1.bf16.msra.mxu0 0
        %419 = vmatprep.subr.bf16.mxu0 %v400
        %420 = vmatpush1.bf16.msra.mxu0 %v397
        %421 = vmatprep.subr.bf16.mxu0 0
        %422 = vmatpush2.bf16.msra.mxu0 0
        %423 = vmatprep.subr.bf16.mxu0 0
        %424 = vmatpush2.bf16.msra.mxu0 0
        %425 = vmatprep.subr.bf16.mxu0 0
        %426 = vmatpush2.bf16.msra.mxu0 0
        %427 = vmatprep.subr.bf16.mxu0 0
        %428 = vmatpush2.bf16.msra.mxu0 0
        %429 = vmatprep.subr.bf16.mxu0 0
        %430 = vmatpush2.bf16.msra.mxu0 0
        %431 = vmatprep.subr.bf16.mxu0 0
        %432 = vmatpush2.bf16.msra.mxu0 0
        %433 = vmatprep.subr.bf16.mxu0 0
        %434 = vmatpush2.bf16.msra.mxu0 0
        %435 = vmatprep.subr.bf16.mxu0 0
        %436 = vmatpush2.bf16.msra.mxu0 0
        %437 = vmatprep.mubr.bf16.mxu0 0
        %438 = vmatmul.mubr.bf16.gmra.mxu0 %v394
        %v439 = vpop.f32.mrf.mxu0
        %v440 = vadd.f32 %v347, %v439
        %v441 = vpop.f32.mrf.mxu0
        %v442 = vadd.f32 %v349, %v441
        %v443 = vpop.f32.mrf.mxu0
        %v444 = vpop.f32.mrf.mxu0
        %445 = vdwg.mxu0
        %446 = vmatprep.subr.bf16.mxu0 0
        %447 = vmatpush1.bf16.msra.mxu0 0
        %448 = vmatprep.subr.bf16.mxu0 0
        %449 = vmatpush1.bf16.msra.mxu0 0
        %450 = vmatprep.subr.bf16.mxu0 0
        %451 = vmatpush1.bf16.msra.mxu0 0
        %452 = vmatprep.subr.bf16.mxu0 0
        %453 = vmatpush1.bf16.msra.mxu0 0
        %454 = vmatprep.subr.bf16.mxu0 0
        %455 = vmatpush1.bf16.msra.mxu0 0
        %456 = vmatprep.subr.bf16.mxu0 0
        %457 = vmatpush1.bf16.msra.mxu0 0
        %458 = vmatprep.subr.bf16.mxu0 0
        %459 = vmatpush1.bf16.msra.mxu0 0
        %460 = vmatprep.subr.bf16.mxu0 0
        %461 = vmatpush1.bf16.msra.mxu0 %v403
        %462 = vmatprep.subr.bf16.mxu0 0
        %463 = vmatpush2.bf16.msra.mxu0 0
        %464 = vmatprep.subr.bf16.mxu0 0
        %465 = vmatpush2.bf16.msra.mxu0 0
        %466 = vmatprep.subr.bf16.mxu0 0
        %467 = vmatpush2.bf16.msra.mxu0 0
        %468 = vmatprep.subr.bf16.mxu0 0
        %469 = vmatpush2.bf16.msra.mxu0 0
        %470 = vmatprep.subr.bf16.mxu0 0
        %471 = vmatpush2.bf16.msra.mxu0 0
        %472 = vmatprep.subr.bf16.mxu0 0
        %473 = vmatpush2.bf16.msra.mxu0 0
        %474 = vmatprep.subr.bf16.mxu0 0
        %475 = vmatpush2.bf16.msra.mxu0 0
        %476 = vmatprep.subr.bf16.mxu0 0
        %477 = vmatpush2.bf16.msra.mxu0 0
        %478 = vmatprep.mubr.bf16.mxu0 0
        %479 = vmatmul.mubr.bf16.gmra.mxu0 %v394
        %v480 = vpop.f32.mrf.mxu0
        %v481 = vadd.f32 %v388, %v480
        %v482 = vpop.f32.mrf.mxu0
        %v483 = vpop.f32.mrf.mxu0
        %v484 = vpop.f32.mrf.mxu0
        %485 = vdwg.mxu0
        %v486 = vld [vmem:[%s257] sm:$0x3f]
        %v487 = vld [vmem:[%s1] sm:$0xf]
        %v489 = vunpack.c.l.b16 %v487
        %v490 = vpack.c.b16 %v489, %v489
        %491 = vrot.lane.b32.xlu0 %v490, 120
        %v492 = vpop.permute.xlu0 %491
        %v494 = vcombine.high %v486, %v486
        %v496 = vunpack.c.l.s4 1983009808
        %v497 = vunpack.c.0.s8 %v496
        %v498 = vlaneseq
        %v499 = vshrl.u32 %v498, 7
        %v500 = vsub.s32 %v497, %v499
        %v501 = vrot.slane %v486, %v500
        %v503 = vunpack.c.l.s4 1983009808
        %v504 = vunpack.c.0.s8 %v503
        %v505 = vlaneseq
        %v506 = vshrl.u32 %v505, 7
        %v507 = vsub.s32 %v504, %v506
        %v508 = vrot.slane %v494, %v507
        %v509 = vcombine.high %v501, %v501
        %510 = vrot.lane.b32.xlu0 %v501, 126
        %v511 = vpop.permute.xlu0 %510
        %512 = vrot.lane.b32.xlu0 %v509, 126
        %v513 = vpop.permute.xlu0 %512
        %514 = vrot.lane.b32.xlu0 %v508, 126
        %v515 = vpop.permute.xlu0 %514
        %vm516 = vcmask 1031168
        %v517 = vsel %vm516, %v511, %v513
        %v518 = vsel %vm516, %v513, %v515
        %v520 = vsel %vm298, %v492, 0
        %v523 = vsel %vm302, %v517, 0
        %v526 = vsel %vm302, %v518, 0
        %v529 = vsel %vm302, %v515, 0
        %531 = vmatprep.subr.bf16.mxu0 0
        %532 = vmatpush1.bf16.msra.mxu0 0
        %533 = vmatprep.subr.bf16.mxu0 0
        %534 = vmatpush1.bf16.msra.mxu0 0
        %535 = vmatprep.subr.bf16.mxu0 0
        %536 = vmatpush1.bf16.msra.mxu0 0
        %537 = vmatprep.subr.bf16.mxu0 0
        %538 = vmatpush1.bf16.msra.mxu0 0
        %539 = vmatprep.subr.bf16.mxu0 0
        %540 = vmatpush1.bf16.msra.mxu0 0
        %541 = vmatprep.subr.bf16.mxu0 0
        %542 = vmatpush1.bf16.msra.mxu0 0
        %543 = vmatprep.subr.bf16.mxu0 0
        %544 = vmatpush1.bf16.msra.mxu0 0
        %545 = vmatprep.subr.bf16.mxu0 %v526
        %546 = vmatpush1.bf16.msra.mxu0 %v523
        %547 = vmatprep.subr.bf16.mxu0 0
        %548 = vmatpush2.bf16.msra.mxu0 0
        %549 = vmatprep.subr.bf16.mxu0 0
        %550 = vmatpush2.bf16.msra.mxu0 0
        %551 = vmatprep.subr.bf16.mxu0 0
        %552 = vmatpush2.bf16.msra.mxu0 0
        %553 = vmatprep.subr.bf16.mxu0 0
        %554 = vmatpush2.bf16.msra.mxu0 0
        %555 = vmatprep.subr.bf16.mxu0 0
        %556 = vmatpush2.bf16.msra.mxu0 0
        %557 = vmatprep.subr.bf16.mxu0 0
        %558 = vmatpush2.bf16.msra.mxu0 0
        %559 = vmatprep.subr.bf16.mxu0 0
        %560 = vmatpush2.bf16.msra.mxu0 0
        %561 = vmatprep.subr.bf16.mxu0 0
        %562 = vmatpush2.bf16.msra.mxu0 0
        %563 = vmatprep.mubr.bf16.mxu0 0
        %564 = vmatmul.mubr.bf16.gmra.mxu0 %v520
        %v565 = vpop.f32.mrf.mxu0
        %v566 = vadd.f32 0.0, %v565
        %v567 = vpop.f32.mrf.mxu0
        %v568 = vadd.f32 0.0, %v567
        %v569 = vpop.f32.mrf.mxu0
        %v570 = vpop.f32.mrf.mxu0
        %571 = vdwg.mxu0
        %572 = vmatprep.subr.bf16.mxu0 0
        %573 = vmatpush1.bf16.msra.mxu0 0
        %574 = vmatprep.subr.bf16.mxu0 0
        %575 = vmatpush1.bf16.msra.mxu0 0
        %576 = vmatprep.subr.bf16.mxu0 0
        %577 = vmatpush1.bf16.msra.mxu0 0
        %578 = vmatprep.subr.bf16.mxu0 0
        %579 = vmatpush1.bf16.msra.mxu0 0
        %580 = vmatprep.subr.bf16.mxu0 0
        %581 = vmatpush1.bf16.msra.mxu0 0
        %582 = vmatprep.subr.bf16.mxu0 0
        %583 = vmatpush1.bf16.msra.mxu0 0
        %584 = vmatprep.subr.bf16.mxu0 0
        %585 = vmatpush1.bf16.msra.mxu0 0
        %586 = vmatprep.subr.bf16.mxu0 0
        %587 = vmatpush1.bf16.msra.mxu0 %v529
        %588 = vmatprep.subr.bf16.mxu0 0
        %589 = vmatpush2.bf16.msra.mxu0 0
        %590 = vmatprep.subr.bf16.mxu0 0
        %591 = vmatpush2.bf16.msra.mxu0 0
        %592 = vmatprep.subr.bf16.mxu0 0
        %593 = vmatpush2.bf16.msra.mxu0 0
        %594 = vmatprep.subr.bf16.mxu0 0
        %595 = vmatpush2.bf16.msra.mxu0 0
        %596 = vmatprep.subr.bf16.mxu0 0
        %597 = vmatpush2.bf16.msra.mxu0 0
        %598 = vmatprep.subr.bf16.mxu0 0
        %599 = vmatpush2.bf16.msra.mxu0 0
        %600 = vmatprep.subr.bf16.mxu0 0
        %601 = vmatpush2.bf16.msra.mxu0 0
        %602 = vmatprep.subr.bf16.mxu0 0
        %603 = vmatpush2.bf16.msra.mxu0 0
        %604 = vmatprep.mubr.bf16.mxu0 0
        %605 = vmatmul.mubr.bf16.gmra.mxu0 %v520
        %v606 = vpop.f32.mrf.mxu0
        %v607 = vadd.f32 0.0, %v606
        %v608 = vpop.f32.mrf.mxu0
        %v609 = vpop.f32.mrf.mxu0
        %v610 = vpop.f32.mrf.mxu0
        %611 = vdwg.mxu0
        %v612 = vadd.f32 %v440, %v566
        %v613 = vadd.f32 %v442, %v568
        %v614 = vadd.f32 %v481, %v607
        %v615 = vld [vmem:[%s257] sm:$0x3f]
        %v616 = vld [vmem:[%s1] sm:$0xf]
        %v618 = vunpack.c.l.b16 %v616
        %v619 = vpack.c.b16 %v618, %v618
        %620 = vrot.lane.b32.xlu0 %v619, 116
        %v621 = vpop.permute.xlu0 %620
        %v623 = vcombine.high %v615, %v615
        %v625 = vunpack.c.l.s4 1983009808
        %v626 = vunpack.c.0.s8 %v625
        %v627 = vlaneseq
        %v628 = vshrl.u32 %v627, 7
        %v629 = vsub.s32 %v626, %v628
        %v630 = vrot.slane %v615, %v629
        %v632 = vunpack.c.l.s4 1983009808
        %v633 = vunpack.c.0.s8 %v632
        %v634 = vlaneseq
        %v635 = vshrl.u32 %v634, 7
        %v636 = vsub.s32 %v633, %v635
        %v637 = vrot.slane %v623, %v636
        %v638 = vcombine.high %v630, %v630
        %639 = vrot.lane.b32.xlu0 %v630, 110
        %v640 = vpop.permute.xlu0 %639
        %641 = vrot.lane.b32.xlu0 %v638, 110
        %v642 = vpop.permute.xlu0 %641
        %643 = vrot.lane.b32.xlu0 %v637, 110
        %v644 = vpop.permute.xlu0 %643
        %vm645 = vcmask 900096
        %v646 = vsel %vm645, %v640, %v642
        %v647 = vsel %vm645, %v642, %v644
        %v649 = vsel %vm298, %v621, 0
        %v652 = vsel %vm302, %v646, 0
        %v655 = vsel %vm302, %v647, 0
        %v658 = vsel %vm302, %v644, 0
        %660 = vmatprep.subr.bf16.mxu0 0
        %661 = vmatpush1.bf16.msra.mxu0 0
        %662 = vmatprep.subr.bf16.mxu0 0
        %663 = vmatpush1.bf16.msra.mxu0 0
        %664 = vmatprep.subr.bf16.mxu0 0
        %665 = vmatpush1.bf16.msra.mxu0 0
        %666 = vmatprep.subr.bf16.mxu0 0
        %667 = vmatpush1.bf16.msra.mxu0 0
        %668 = vmatprep.subr.bf16.mxu0 0
        %669 = vmatpush1.bf16.msra.mxu0 0
        %670 = vmatprep.subr.bf16.mxu0 0
        %671 = vmatpush1.bf16.msra.mxu0 0
        %672 = vmatprep.subr.bf16.mxu0 0
        %673 = vmatpush1.bf16.msra.mxu0 0
        %674 = vmatprep.subr.bf16.mxu0 %v655
        %675 = vmatpush1.bf16.msra.mxu0 %v652
        %676 = vmatprep.subr.bf16.mxu0 0
        %677 = vmatpush2.bf16.msra.mxu0 0
        %678 = vmatprep.subr.bf16.mxu0 0
        %679 = vmatpush2.bf16.msra.mxu0 0
        %680 = vmatprep.subr.bf16.mxu0 0
        %681 = vmatpush2.bf16.msra.mxu0 0
        %682 = vmatprep.subr.bf16.mxu0 0
        %683 = vmatpush2.bf16.msra.mxu0 0
        %684 = vmatprep.subr.bf16.mxu0 0
        %685 = vmatpush2.bf16.msra.mxu0 0
        %686 = vmatprep.subr.bf16.mxu0 0
        %687 = vmatpush2.bf16.msra.mxu0 0
        %688 = vmatprep.subr.bf16.mxu0 0
        %689 = vmatpush2.bf16.msra.mxu0 0
        %690 = vmatprep.subr.bf16.mxu0 0
        %691 = vmatpush2.bf16.msra.mxu0 0
        %692 = vmatprep.mubr.bf16.mxu0 0
        %693 = vmatmul.mubr.bf16.gmra.mxu0 %v649
        %v694 = vpop.f32.mrf.mxu0
        %v695 = vadd.f32 0.0, %v694
        %v696 = vpop.f32.mrf.mxu0
        %v697 = vadd.f32 0.0, %v696
        %v698 = vpop.f32.mrf.mxu0
        %v699 = vpop.f32.mrf.mxu0
        %700 = vdwg.mxu0
        %701 = vmatprep.subr.bf16.mxu0 0
        %702 = vmatpush1.bf16.msra.mxu0 0
        %703 = vmatprep.subr.bf16.mxu0 0
        %704 = vmatpush1.bf16.msra.mxu0 0
        %705 = vmatprep.subr.bf16.mxu0 0
        %706 = vmatpush1.bf16.msra.mxu0 0
        %707 = vmatprep.subr.bf16.mxu0 0
        %708 = vmatpush1.bf16.msra.mxu0 0
        %709 = vmatprep.subr.bf16.mxu0 0
        %710 = vmatpush1.bf16.msra.mxu0 0
        %711 = vmatprep.subr.bf16.mxu0 0
        %712 = vmatpush1.bf16.msra.mxu0 0
        %713 = vmatprep.subr.bf16.mxu0 0
        %714 = vmatpush1.bf16.msra.mxu0 0
        %715 = vmatprep.subr.bf16.mxu0 0
        %716 = vmatpush1.bf16.msra.mxu0 %v658
        %717 = vmatprep.subr.bf16.mxu0 0
        %718 = vmatpush2.bf16.msra.mxu0 0
        %719 = vmatprep.subr.bf16.mxu0 0
        %720 = vmatpush2.bf16.msra.mxu0 0
        %721 = vmatprep.subr.bf16.mxu0 0
        %722 = vmatpush2.bf16.msra.mxu0 0
        %723 = vmatprep.subr.bf16.mxu0 0
        %724 = vmatpush2.bf16.msra.mxu0 0
        %725 = vmatprep.subr.bf16.mxu0 0
        %726 = vmatpush2.bf16.msra.mxu0 0
        %727 = vmatprep.subr.bf16.mxu0 0
        %728 = vmatpush2.bf16.msra.mxu0 0
        %729 = vmatprep.subr.bf16.mxu0 0
        %730 = vmatpush2.bf16.msra.mxu0 0
        %731 = vmatprep.subr.bf16.mxu0 0
        %732 = vmatpush2.bf16.msra.mxu0 0
        %733 = vmatprep.mubr.bf16.mxu0 0
        %734 = vmatmul.mubr.bf16.gmra.mxu0 %v649
        %v735 = vpop.f32.mrf.mxu0
        %v736 = vadd.f32 0.0, %v735
        %v737 = vpop.f32.mrf.mxu0
        %v738 = vpop.f32.mrf.mxu0
        %v739 = vpop.f32.mrf.mxu0
        %740 = vdwg.mxu0
        %v741 = vadd.f32 %v612, %v695
        %v742 = vadd.f32 %v613, %v697
        %v743 = vadd.f32 %v614, %v736
        %v744 = vld [vmem:[%s257] sm:$0x3f]
        %v745 = vld [vmem:[%s1] sm:$0xf]
        %v747 = vunpack.c.l.b16 %v745
        %v748 = vpack.c.b16 %v747, %v747
        %749 = vrot.lane.b32.xlu0 %v748, 112
        %v750 = vpop.permute.xlu0 %749
        %v752 = vcombine.high %v744, %v744
        %v754 = vunpack.c.l.s4 1983009808
        %v755 = vunpack.c.0.s8 %v754
        %v756 = vlaneseq
        %v757 = vshrl.u32 %v756, 7
        %v758 = vsub.s32 %v755, %v757
        %v759 = vrot.slane %v744, %v758
        %v761 = vunpack.c.l.s4 1983009808
        %v762 = vunpack.c.0.s8 %v761
        %v763 = vlaneseq
        %v764 = vshrl.u32 %v763, 7
        %v765 = vsub.s32 %v762, %v764
        %v766 = vrot.slane %v752, %v765
        %v767 = vcombine.high %v759, %v759
        %768 = vrot.lane.b32.xlu0 %v759, 109
        %v769 = vpop.permute.xlu0 %768
        %770 = vrot.lane.b32.xlu0 %v767, 109
        %v771 = vpop.permute.xlu0 %770
        %772 = vrot.lane.b32.xlu0 %v766, 109
        %v773 = vpop.permute.xlu0 %772
        %vm774 = vcmask 891904
        %v775 = vsel %vm774, %v769, %v771
        %v776 = vsel %vm774, %v771, %v773
        %v778 = vsel %vm298, %v750, 0
        %v781 = vsel %vm302, %v775, 0
        %v784 = vsel %vm302, %v776, 0
        %v787 = vsel %vm302, %v773, 0
        %789 = vmatprep.subr.bf16.mxu0 0
        %790 = vmatpush1.bf16.msra.mxu0 0
        %791 = vmatprep.subr.bf16.mxu0 0
        %792 = vmatpush1.bf16.msra.mxu0 0
        %793 = vmatprep.subr.bf16.mxu0 0
        %794 = vmatpush1.bf16.msra.mxu0 0
        %795 = vmatprep.subr.bf16.mxu0 0
        %796 = vmatpush1.bf16.msra.mxu0 0
        %797 = vmatprep.subr.bf16.mxu0 0
        %798 = vmatpush1.bf16.msra.mxu0 0
        %799 = vmatprep.subr.bf16.mxu0 0
        %800 = vmatpush1.bf16.msra.mxu0 0
        %801 = vmatprep.subr.bf16.mxu0 0
        %802 = vmatpush1.bf16.msra.mxu0 0
        %803 = vmatprep.subr.bf16.mxu0 %v784
        %804 = vmatpush1.bf16.msra.mxu0 %v781
        %805 = vmatprep.subr.bf16.mxu0 0
        %806 = vmatpush2.bf16.msra.mxu0 0
        %807 = vmatprep.subr.bf16.mxu0 0
        %808 = vmatpush2.bf16.msra.mxu0 0
        %809 = vmatprep.subr.bf16.mxu0 0
        %810 = vmatpush2.bf16.msra.mxu0 0
        %811 = vmatprep.subr.bf16.mxu0 0
        %812 = vmatpush2.bf16.msra.mxu0 0
        %813 = vmatprep.subr.bf16.mxu0 0
        %814 = vmatpush2.bf16.msra.mxu0 0
        %815 = vmatprep.subr.bf16.mxu0 0
        %816 = vmatpush2.bf16.msra.mxu0 0
        %817 = vmatprep.subr.bf16.mxu0 0
        %818 = vmatpush2.bf16.msra.mxu0 0
        %819 = vmatprep.subr.bf16.mxu0 0
        %820 = vmatpush2.bf16.msra.mxu0 0
        %821 = vmatprep.mubr.bf16.mxu0 0
        %822 = vmatmul.mubr.bf16.gmra.mxu0 %v778
        %v823 = vpop.f32.mrf.mxu0
        %v824 = vadd.f32 0.0, %v823
        %v825 = vpop.f32.mrf.mxu0
        %v826 = vadd.f32 0.0, %v825
        %v827 = vpop.f32.mrf.mxu0
        %v828 = vpop.f32.mrf.mxu0
        %829 = vdwg.mxu0
        %830 = vmatprep.subr.bf16.mxu0 0
        %831 = vmatpush1.bf16.msra.mxu0 0
        %832 = vmatprep.subr.bf16.mxu0 0
        %833 = vmatpush1.bf16.msra.mxu0 0
        %834 = vmatprep.subr.bf16.mxu0 0
        %835 = vmatpush1.bf16.msra.mxu0 0
        %836 = vmatprep.subr.bf16.mxu0 0
        %837 = vmatpush1.bf16.msra.mxu0 0
        %838 = vmatprep.subr.bf16.mxu0 0
        %839 = vmatpush1.bf16.msra.mxu0 0
        %840 = vmatprep.subr.bf16.mxu0 0
        %841 = vmatpush1.bf16.msra.mxu0 0
        %842 = vmatprep.subr.bf16.mxu0 0
        %843 = vmatpush1.bf16.msra.mxu0 0
        %844 = vmatprep.subr.bf16.mxu0 0
        %845 = vmatpush1.bf16.msra.mxu0 %v787
        %846 = vmatprep.subr.bf16.mxu0 0
        %847 = vmatpush2.bf16.msra.mxu0 0
        %848 = vmatprep.subr.bf16.mxu0 0
        %849 = vmatpush2.bf16.msra.mxu0 0
        %850 = vmatprep.subr.bf16.mxu0 0
        %851 = vmatpush2.bf16.msra.mxu0 0
        %852 = vmatprep.subr.bf16.mxu0 0
        %853 = vmatpush2.bf16.msra.mxu0 0
        %854 = vmatprep.subr.bf16.mxu0 0
        %855 = vmatpush2.bf16.msra.mxu0 0
        %856 = vmatprep.subr.bf16.mxu0 0
        %857 = vmatpush2.bf16.msra.mxu0 0
        %858 = vmatprep.subr.bf16.mxu0 0
        %859 = vmatpush2.bf16.msra.mxu0 0
        %860 = vmatprep.subr.bf16.mxu0 0
        %861 = vmatpush2.bf16.msra.mxu0 0
        %862 = vmatprep.mubr.bf16.mxu0 0
        %863 = vmatmul.mubr.bf16.gmra.mxu0 %v778
        %v864 = vpop.f32.mrf.mxu0
        %v865 = vadd.f32 0.0, %v864
        %v866 = vpop.f32.mrf.mxu0
        %v867 = vpop.f32.mrf.mxu0
        %v868 = vpop.f32.mrf.mxu0
        %869 = vdwg.mxu0
        %v870 = vadd.f32 %v741, %v824
        %v871 = vadd.f32 %v742, %v826
        %v872 = vadd.f32 %v743, %v865
        %v873 = vld [vmem:[%s257] sm:$0x3f]
        %v874 = vld [vmem:[%s1] sm:$0xf]
        %v876 = vunpack.c.l.b16 %v874
        %v877 = vpack.c.b16 %v876, %v876
        %878 = vrot.lane.b32.xlu0 %v877, 108
        %v879 = vpop.permute.xlu0 %878
        %v881 = vcombine.high %v873, %v873
        %v883 = vunpack.c.l.s4 1983009808
        %v884 = vunpack.c.0.s8 %v883
        %v885 = vlaneseq
        %v886 = vshrl.u32 %v885, 7
        %v887 = vsub.s32 %v884, %v886
        %v888 = vrot.slane %v873, %v887
        %v890 = vunpack.c.l.s4 1983009808
        %v891 = vunpack.c.0.s8 %v890
        %v892 = vlaneseq
        %v893 = vshrl.u32 %v892, 7
        %v894 = vsub.s32 %v891, %v893
        %v895 = vrot.slane %v881, %v894
        %v896 = vcombine.high %v888, %v888
        %897 = vrot.lane.b32.xlu0 %v888, 108
        %v898 = vpop.permute.xlu0 %897
        %899 = vrot.lane.b32.xlu0 %v896, 108
        %v900 = vpop.permute.xlu0 %899
        %901 = vrot.lane.b32.xlu0 %v895, 108
        %v902 = vpop.permute.xlu0 %901
        %vm903 = vcmask 883712
        %v904 = vsel %vm903, %v898, %v900
        %v905 = vsel %vm903, %v900, %v902
        %v907 = vsel %vm298, %v879, 0
        %v910 = vsel %vm302, %v904, 0
        %v913 = vsel %vm302, %v905, 0
        %v916 = vsel %vm302, %v902, 0
        %918 = vmatprep.subr.bf16.mxu0 0
        %919 = vmatpush1.bf16.msra.mxu0 0
        %920 = vmatprep.subr.bf16.mxu0 0
        %921 = vmatpush1.bf16.msra.mxu0 0
        %922 = vmatprep.subr.bf16.mxu0 0
        %923 = vmatpush1.bf16.msra.mxu0 0
        %924 = vmatprep.subr.bf16.mxu0 0
        %925 = vmatpush1.bf16.msra.mxu0 0
        %926 = vmatprep.subr.bf16.mxu0 0
        %927 = vmatpush1.bf16.msra.mxu0 0
        %928 = vmatprep.subr.bf16.mxu0 0
        %929 = vmatpush1.bf16.msra.mxu0 0
        %930 = vmatprep.subr.bf16.mxu0 0
        %931 = vmatpush1.bf16.msra.mxu0 0
        %932 = vmatprep.subr.bf16.mxu0 %v913
        %933 = vmatpush1.bf16.msra.mxu0 %v910
        %934 = vmatprep.subr.bf16.mxu0 0
        %935 = vmatpush2.bf16.msra.mxu0 0
        %936 = vmatprep.subr.bf16.mxu0 0
        %937 = vmatpush2.bf16.msra.mxu0 0
        %938 = vmatprep.subr.bf16.mxu0 0
        %939 = vmatpush2.bf16.msra.mxu0 0
        %940 = vmatprep.subr.bf16.mxu0 0
        %941 = vmatpush2.bf16.msra.mxu0 0
        %942 = vmatprep.subr.bf16.mxu0 0
        %943 = vmatpush2.bf16.msra.mxu0 0
        %944 = vmatprep.subr.bf16.mxu0 0
        %945 = vmatpush2.bf16.msra.mxu0 0
        %946 = vmatprep.subr.bf16.mxu0 0
        %947 = vmatpush2.bf16.msra.mxu0 0
        %948 = vmatprep.subr.bf16.mxu0 0
        %949 = vmatpush2.bf16.msra.mxu0 0
        %950 = vmatprep.mubr.bf16.mxu0 0
        %951 = vmatmul.mubr.bf16.gmra.mxu0 %v907
        %v952 = vpop.f32.mrf.mxu0
        %v953 = vadd.f32 0.0, %v952
        %v954 = vpop.f32.mrf.mxu0
        %v955 = vadd.f32 0.0, %v954
        %v956 = vpop.f32.mrf.mxu0
        %v957 = vpop.f32.mrf.mxu0
        %958 = vdwg.mxu0
        %959 = vmatprep.subr.bf16.mxu0 0
        %960 = vmatpush1.bf16.msra.mxu0 0
        %961 = vmatprep.subr.bf16.mxu0 0
        %962 = vmatpush1.bf16.msra.mxu0 0
        %963 = vmatprep.subr.bf16.mxu0 0
        %964 = vmatpush1.bf16.msra.mxu0 0
        %965 = vmatprep.subr.bf16.mxu0 0
        %966 = vmatpush1.bf16.msra.mxu0 0
        %967 = vmatprep.subr.bf16.mxu0 0
        %968 = vmatpush1.bf16.msra.mxu0 0
        %969 = vmatprep.subr.bf16.mxu0 0
        %970 = vmatpush1.bf16.msra.mxu0 0
        %971 = vmatprep.subr.bf16.mxu0 0
        %972 = vmatpush1.bf16.msra.mxu0 0
        %973 = vmatprep.subr.bf16.mxu0 0
        %974 = vmatpush1.bf16.msra.mxu0 %v916
        %975 = vmatprep.subr.bf16.mxu0 0
        %976 = vmatpush2.bf16.msra.mxu0 0
        %977 = vmatprep.subr.bf16.mxu0 0
        %978 = vmatpush2.bf16.msra.mxu0 0
        %979 = vmatprep.subr.bf16.mxu0 0
        %980 = vmatpush2.bf16.msra.mxu0 0
        %981 = vmatprep.subr.bf16.mxu0 0
        %982 = vmatpush2.bf16.msra.mxu0 0
        %983 = vmatprep.subr.bf16.mxu0 0
        %984 = vmatpush2.bf16.msra.mxu0 0
        %985 = vmatprep.subr.bf16.mxu0 0
        %986 = vmatpush2.bf16.msra.mxu0 0
        %987 = vmatprep.subr.bf16.mxu0 0
        %988 = vmatpush2.bf16.msra.mxu0 0
        %989 = vmatprep.subr.bf16.mxu0 0
        %990 = vmatpush2.bf16.msra.mxu0 0
        %991 = vmatprep.mubr.bf16.mxu0 0
        %992 = vmatmul.mubr.bf16.gmra.mxu0 %v907
        %v993 = vpop.f32.mrf.mxu0
        %v994 = vadd.f32 0.0, %v993
        %v995 = vpop.f32.mrf.mxu0
        %v996 = vpop.f32.mrf.mxu0
        %v997 = vpop.f32.mrf.mxu0
        %998 = vdwg.mxu0
        %v999 = vadd.f32 %v870, %v953
        %v1000 = vadd.f32 %v871, %v955
        %v1001 = vadd.f32 %v872, %v994
        %v1002 = vld [vmem:[%s257] sm:$0x3f]
        %v1003 = vld [vmem:[%s1] sm:$0xf]
        %v1005 = vunpack.c.l.b16 %v1003
        %v1006 = vpack.c.b16 %v1005, %v1005
        %1007 = vrot.lane.b32.xlu0 %v1006, 104
        %v1008 = vpop.permute.xlu0 %1007
        %v1010 = vcombine.high %v1002, %v1002
        %v1012 = vunpack.c.l.s4 1983009808
        %v1013 = vunpack.c.0.s8 %v1012
        %v1014 = vlaneseq
        %v1015 = vshrl.u32 %v1014, 7
        %v1016 = vsub.s32 %v1013, %v1015
        %v1017 = vrot.slane %v1002, %v1016
        %v1019 = vunpack.c.l.s4 1983009808
        %v1020 = vunpack.c.0.s8 %v1019
        %v1021 = vlaneseq
        %v1022 = vshrl.u32 %v1021, 7
        %v1023 = vsub.s32 %v1020, %v1022
        %v1024 = vrot.slane %v1010, %v1023
        %v1025 = vcombine.high %v1017, %v1017
        %1026 = vrot.lane.b32.xlu0 %v1017, 92
        %v1027 = vpop.permute.xlu0 %1026
        %1028 = vrot.lane.b32.xlu0 %v1025, 92
        %v1029 = vpop.permute.xlu0 %1028
        %1030 = vrot.lane.b32.xlu0 %v1024, 92
        %v1031 = vpop.permute.xlu0 %1030
        %vm1032 = vcmask 752640
        %v1033 = vsel %vm1032, %v1027, %v1029
        %v1034 = vsel %vm1032, %v1029, %v1031
        %v1036 = vsel %vm298, %v1008, 0
        %v1039 = vsel %vm302, %v1033, 0
        %v1042 = vsel %vm302, %v1034, 0
        %v1045 = vsel %vm302, %v1031, 0
        %1047 = vmatprep.subr.bf16.mxu0 0
        %1048 = vmatpush1.bf16.msra.mxu0 0
        %1049 = vmatprep.subr.bf16.mxu0 0
        %1050 = vmatpush1.bf16.msra.mxu0 0
        %1051 = vmatprep.subr.bf16.mxu0 0
        %1052 = vmatpush1.bf16.msra.mxu0 0
        %1053 = vmatprep.subr.bf16.mxu0 0
        %1054 = vmatpush1.bf16.msra.mxu0 0
        %1055 = vmatprep.subr.bf16.mxu0 0
        %1056 = vmatpush1.bf16.msra.mxu0 0
        %1057 = vmatprep.subr.bf16.mxu0 0
        %1058 = vmatpush1.bf16.msra.mxu0 0
        %1059 = vmatprep.subr.bf16.mxu0 0
        %1060 = vmatpush1.bf16.msra.mxu0 0
        %1061 = vmatprep.subr.bf16.mxu0 %v1042
        %1062 = vmatpush1.bf16.msra.mxu0 %v1039
        %1063 = vmatprep.subr.bf16.mxu0 0
        %1064 = vmatpush2.bf16.msra.mxu0 0
        %1065 = vmatprep.subr.bf16.mxu0 0
        %1066 = vmatpush2.bf16.msra.mxu0 0
        %1067 = vmatprep.subr.bf16.mxu0 0
        %1068 = vmatpush2.bf16.msra.mxu0 0
        %1069 = vmatprep.subr.bf16.mxu0 0
        %1070 = vmatpush2.bf16.msra.mxu0 0
        %1071 = vmatprep.subr.bf16.mxu0 0
        %1072 = vmatpush2.bf16.msra.mxu0 0
        %1073 = vmatprep.subr.bf16.mxu0 0
        %1074 = vmatpush2.bf16.msra.mxu0 0
        %1075 = vmatprep.subr.bf16.mxu0 0
        %1076 = vmatpush2.bf16.msra.mxu0 0
        %1077 = vmatprep.subr.bf16.mxu0 0
        %1078 = vmatpush2.bf16.msra.mxu0 0
        %1079 = vmatprep.mubr.bf16.mxu0 0
        %1080 = vmatmul.mubr.bf16.gmra.mxu0 %v1036
        %v1081 = vpop.f32.mrf.mxu0
        %v1082 = vadd.f32 0.0, %v1081
        %v1083 = vpop.f32.mrf.mxu0
        %v1084 = vadd.f32 0.0, %v1083
        %v1085 = vpop.f32.mrf.mxu0
        %v1086 = vpop.f32.mrf.mxu0
        %1087 = vdwg.mxu0
        %1088 = vmatprep.subr.bf16.mxu0 0
        %1089 = vmatpush1.bf16.msra.mxu0 0
        %1090 = vmatprep.subr.bf16.mxu0 0
        %1091 = vmatpush1.bf16.msra.mxu0 0
        %1092 = vmatprep.subr.bf16.mxu0 0
        %1093 = vmatpush1.bf16.msra.mxu0 0
        %1094 = vmatprep.subr.bf16.mxu0 0
        %1095 = vmatpush1.bf16.msra.mxu0 0
        %1096 = vmatprep.subr.bf16.mxu0 0
        %1097 = vmatpush1.bf16.msra.mxu0 0
        %1098 = vmatprep.subr.bf16.mxu0 0
        %1099 = vmatpush1.bf16.msra.mxu0 0
        %1100 = vmatprep.subr.bf16.mxu0 0
        %1101 = vmatpush1.bf16.msra.mxu0 0
        %1102 = vmatprep.subr.bf16.mxu0 0
        %1103 = vmatpush1.bf16.msra.mxu0 %v1045
        %1104 = vmatprep.subr.bf16.mxu0 0
        %1105 = vmatpush2.bf16.msra.mxu0 0
        %1106 = vmatprep.subr.bf16.mxu0 0
        %1107 = vmatpush2.bf16.msra.mxu0 0
        %1108 = vmatprep.subr.bf16.mxu0 0
        %1109 = vmatpush2.bf16.msra.mxu0 0
        %1110 = vmatprep.subr.bf16.mxu0 0
        %1111 = vmatpush2.bf16.msra.mxu0 0
        %1112 = vmatprep.subr.bf16.mxu0 0
        %1113 = vmatpush2.bf16.msra.mxu0 0
        %1114 = vmatprep.subr.bf16.mxu0 0
        %1115 = vmatpush2.bf16.msra.mxu0 0
        %1116 = vmatprep.subr.bf16.mxu0 0
        %1117 = vmatpush2.bf16.msra.mxu0 0
        %1118 = vmatprep.subr.bf16.mxu0 0
        %1119 = vmatpush2.bf16.msra.mxu0 0
        %1120 = vmatprep.mubr.bf16.mxu0 0
        %1121 = vmatmul.mubr.bf16.gmra.mxu0 %v1036
        %v1122 = vpop.f32.mrf.mxu0
        %v1123 = vadd.f32 0.0, %v1122
        %v1124 = vpop.f32.mrf.mxu0
        %v1125 = vpop.f32.mrf.mxu0
        %v1126 = vpop.f32.mrf.mxu0
        %1127 = vdwg.mxu0
        %v1128 = vadd.f32 %v999, %v1082
        %v1129 = vadd.f32 %v1000, %v1084
        %v1130 = vadd.f32 %v1001, %v1123
        %v1131 = vld [vmem:[%s257] sm:$0x3f]
        %v1132 = vld [vmem:[%s1] sm:$0xf]
        %v1134 = vunpack.c.l.b16 %v1132
        %v1135 = vpack.c.b16 %v1134, %v1134
        %1136 = vrot.lane.b32.xlu0 %v1135, 100
        %v1137 = vpop.permute.xlu0 %1136
        %v1139 = vcombine.high %v1131, %v1131
        %v1141 = vunpack.c.l.s4 1983009808
        %v1142 = vunpack.c.0.s8 %v1141
        %v1143 = vlaneseq
        %v1144 = vshrl.u32 %v1143, 7
        %v1145 = vsub.s32 %v1142, %v1144
        %v1146 = vrot.slane %v1131, %v1145
        %v1148 = vunpack.c.l.s4 1983009808
        %v1149 = vunpack.c.0.s8 %v1148
        %v1150 = vlaneseq
        %v1151 = vshrl.u32 %v1150, 7
        %v1152 = vsub.s32 %v1149, %v1151
        %v1153 = vrot.slane %v1139, %v1152
        %v1154 = vcombine.high %v1146, %v1146
        %1155 = vrot.lane.b32.xlu0 %v1146, 91
        %v1156 = vpop.permute.xlu0 %1155
        %1157 = vrot.lane.b32.xlu0 %v1154, 91
        %v1158 = vpop.permute.xlu0 %1157
        %1159 = vrot.lane.b32.xlu0 %v1153, 91
        %v1160 = vpop.permute.xlu0 %1159
        %vm1161 = vcmask 744448
        %v1162 = vsel %vm1161, %v1156, %v1158
        %v1163 = vsel %vm1161, %v1158, %v1160
        %v1165 = vsel %vm298, %v1137, 0
        %v1168 = vsel %vm302, %v1162, 0
        %v1171 = vsel %vm302, %v1163, 0
        %v1174 = vsel %vm302, %v1160, 0
        %1176 = vmatprep.subr.bf16.mxu0 0
        %1177 = vmatpush1.bf16.msra.mxu0 0
        %1178 = vmatprep.subr.bf16.mxu0 0
        %1179 = vmatpush1.bf16.msra.mxu0 0
        %1180 = vmatprep.subr.bf16.mxu0 0
        %1181 = vmatpush1.bf16.msra.mxu0 0
        %1182 = vmatprep.subr.bf16.mxu0 0
        %1183 = vmatpush1.bf16.msra.mxu0 0
        %1184 = vmatprep.subr.bf16.mxu0 0
        %1185 = vmatpush1.bf16.msra.mxu0 0
        %1186 = vmatprep.subr.bf16.mxu0 0
        %1187 = vmatpush1.bf16.msra.mxu0 0
        %1188 = vmatprep.subr.bf16.mxu0 0
        %1189 = vmatpush1.bf16.msra.mxu0 0
        %1190 = vmatprep.subr.bf16.mxu0 %v1171
        %1191 = vmatpush1.bf16.msra.mxu0 %v1168
        %1192 = vmatprep.subr.bf16.mxu0 0
        %1193 = vmatpush2.bf16.msra.mxu0 0
        %1194 = vmatprep.subr.bf16.mxu0 0
        %1195 = vmatpush2.bf16.msra.mxu0 0
        %1196 = vmatprep.subr.bf16.mxu0 0
        %1197 = vmatpush2.bf16.msra.mxu0 0
        %1198 = vmatprep.subr.bf16.mxu0 0
        %1199 = vmatpush2.bf16.msra.mxu0 0
        %1200 = vmatprep.subr.bf16.mxu0 0
        %1201 = vmatpush2.bf16.msra.mxu0 0
        %1202 = vmatprep.subr.bf16.mxu0 0
        %1203 = vmatpush2.bf16.msra.mxu0 0
        %1204 = vmatprep.subr.bf16.mxu0 0
        %1205 = vmatpush2.bf16.msra.mxu0 0
        %1206 = vmatprep.subr.bf16.mxu0 0
        %1207 = vmatpush2.bf16.msra.mxu0 0
        %1208 = vmatprep.mubr.bf16.mxu0 0
        %1209 = vmatmul.mubr.bf16.gmra.mxu0 %v1165
        %v1210 = vpop.f32.mrf.mxu0
        %v1211 = vadd.f32 0.0, %v1210
        %v1212 = vpop.f32.mrf.mxu0
        %v1213 = vadd.f32 0.0, %v1212
        %v1214 = vpop.f32.mrf.mxu0
        %v1215 = vpop.f32.mrf.mxu0
        %1216 = vdwg.mxu0
        %1217 = vmatprep.subr.bf16.mxu0 0
        %1218 = vmatpush1.bf16.msra.mxu0 0
        %1219 = vmatprep.subr.bf16.mxu0 0
        %1220 = vmatpush1.bf16.msra.mxu0 0
        %1221 = vmatprep.subr.bf16.mxu0 0
        %1222 = vmatpush1.bf16.msra.mxu0 0
        %1223 = vmatprep.subr.bf16.mxu0 0
        %1224 = vmatpush1.bf16.msra.mxu0 0
        %1225 = vmatprep.subr.bf16.mxu0 0
        %1226 = vmatpush1.bf16.msra.mxu0 0
        %1227 = vmatprep.subr.bf16.mxu0 0
        %1228 = vmatpush1.bf16.msra.mxu0 0
        %1229 = vmatprep.subr.bf16.mxu0 0
        %1230 = vmatpush1.bf16.msra.mxu0 0
        %1231 = vmatprep.subr.bf16.mxu0 0
        %1232 = vmatpush1.bf16.msra.mxu0 %v1174
        %1233 = vmatprep.subr.bf16.mxu0 0
        %1234 = vmatpush2.bf16.msra.mxu0 0
        %1235 = vmatprep.subr.bf16.mxu0 0
        %1236 = vmatpush2.bf16.msra.mxu0 0
        %1237 = vmatprep.subr.bf16.mxu0 0
        %1238 = vmatpush2.bf16.msra.mxu0 0
        %1239 = vmatprep.subr.bf16.mxu0 0
        %1240 = vmatpush2.bf16.msra.mxu0 0
        %1241 = vmatprep.subr.bf16.mxu0 0
        %1242 = vmatpush2.bf16.msra.mxu0 0
        %1243 = vmatprep.subr.bf16.mxu0 0
        %1244 = vmatpush2.bf16.msra.mxu0 0
        %1245 = vmatprep.subr.bf16.mxu0 0
        %1246 = vmatpush2.bf16.msra.mxu0 0
        %1247 = vmatprep.subr.bf16.mxu0 0
        %1248 = vmatpush2.bf16.msra.mxu0 0
        %1249 = vmatprep.mubr.bf16.mxu0 0
        %1250 = vmatmul.mubr.bf16.gmra.mxu0 %v1165
        %v1251 = vpop.f32.mrf.mxu0
        %v1252 = vadd.f32 0.0, %v1251
        %v1253 = vpop.f32.mrf.mxu0
        %v1254 = vpop.f32.mrf.mxu0
        %v1255 = vpop.f32.mrf.mxu0
        %1256 = vdwg.mxu0
        %v1257 = vadd.f32 %v1128, %v1211
        %v1258 = vadd.f32 %v1129, %v1213
        %v1259 = vadd.f32 %v1130, %v1252
        %v1260 = vld [vmem:[%s257] sm:$0x3f]
        %v1261 = vld [vmem:[%s1] sm:$0xf]
        %v1263 = vunpack.c.l.b16 %v1261
        %v1264 = vpack.c.b16 %v1263, %v1263
        %1265 = vrot.lane.b32.xlu0 %v1264, 96
        %v1266 = vpop.permute.xlu0 %1265
        %v1268 = vcombine.high %v1260, %v1260
        %v1270 = vunpack.c.l.s4 1983009808
        %v1271 = vunpack.c.0.s8 %v1270
        %v1272 = vlaneseq
        %v1273 = vshrl.u32 %v1272, 7
        %v1274 = vsub.s32 %v1271, %v1273
        %v1275 = vrot.slane %v1260, %v1274
        %v1277 = vunpack.c.l.s4 1983009808
        %v1278 = vunpack.c.0.s8 %v1277
        %v1279 = vlaneseq
        %v1280 = vshrl.u32 %v1279, 7
        %v1281 = vsub.s32 %v1278, %v1280
        %v1282 = vrot.slane %v1268, %v1281
        %v1283 = vcombine.high %v1275, %v1275
        %1284 = vrot.lane.b32.xlu0 %v1275, 90
        %v1285 = vpop.permute.xlu0 %1284
        %1286 = vrot.lane.b32.xlu0 %v1283, 90
        %v1287 = vpop.permute.xlu0 %1286
        %1288 = vrot.lane.b32.xlu0 %v1282, 90
        %v1289 = vpop.permute.xlu0 %1288
        %vm1290 = vcmask 736256
        %v1291 = vsel %vm1290, %v1285, %v1287
        %v1292 = vsel %vm1290, %v1287, %v1289
        %v1294 = vsel %vm298, %v1266, 0
        %v1297 = vsel %vm302, %v1291, 0
        %v1300 = vsel %vm302, %v1292, 0
        %v1303 = vsel %vm302, %v1289, 0
        %1305 = vmatprep.subr.bf16.mxu0 0
        %1306 = vmatpush1.bf16.msra.mxu0 0
        %1307 = vmatprep.subr.bf16.mxu0 0
        %1308 = vmatpush1.bf16.msra.mxu0 0
        %1309 = vmatprep.subr.bf16.mxu0 0
        %1310 = vmatpush1.bf16.msra.mxu0 0
        %1311 = vmatprep.subr.bf16.mxu0 0
        %1312 = vmatpush1.bf16.msra.mxu0 0
        %1313 = vmatprep.subr.bf16.mxu0 0
        %1314 = vmatpush1.bf16.msra.mxu0 0
        %1315 = vmatprep.subr.bf16.mxu0 0
        %1316 = vmatpush1.bf16.msra.mxu0 0
        %1317 = vmatprep.subr.bf16.mxu0 0
        %1318 = vmatpush1.bf16.msra.mxu0 0
        %1319 = vmatprep.subr.bf16.mxu0 %v1300
        %1320 = vmatpush1.bf16.msra.mxu0 %v1297
        %1321 = vmatprep.subr.bf16.mxu0 0
        %1322 = vmatpush2.bf16.msra.mxu0 0
        %1323 = vmatprep.subr.bf16.mxu0 0
        %1324 = vmatpush2.bf16.msra.mxu0 0
        %1325 = vmatprep.subr.bf16.mxu0 0
        %1326 = vmatpush2.bf16.msra.mxu0 0
        %1327 = vmatprep.subr.bf16.mxu0 0
        %1328 = vmatpush2.bf16.msra.mxu0 0
        %1329 = vmatprep.subr.bf16.mxu0 0
        %1330 = vmatpush2.bf16.msra.mxu0 0
        %1331 = vmatprep.subr.bf16.mxu0 0
        %1332 = vmatpush2.bf16.msra.mxu0 0
        %1333 = vmatprep.subr.bf16.mxu0 0
        %1334 = vmatpush2.bf16.msra.mxu0 0
        %1335 = vmatprep.subr.bf16.mxu0 0
        %1336 = vmatpush2.bf16.msra.mxu0 0
        %1337 = vmatprep.mubr.bf16.mxu0 0
        %1338 = vmatmul.mubr.bf16.gmra.mxu0 %v1294
        %v1339 = vpop.f32.mrf.mxu0
        %v1340 = vadd.f32 0.0, %v1339
        %v1341 = vpop.f32.mrf.mxu0
        %v1342 = vadd.f32 0.0, %v1341
        %v1343 = vpop.f32.mrf.mxu0
        %v1344 = vpop.f32.mrf.mxu0
        %1345 = vdwg.mxu0
        %1346 = vmatprep.subr.bf16.mxu0 0
        %1347 = vmatpush1.bf16.msra.mxu0 0
        %1348 = vmatprep.subr.bf16.mxu0 0
        %1349 = vmatpush1.bf16.msra.mxu0 0
        %1350 = vmatprep.subr.bf16.mxu0 0
        %1351 = vmatpush1.bf16.msra.mxu0 0
        %1352 = vmatprep.subr.bf16.mxu0 0
        %1353 = vmatpush1.bf16.msra.mxu0 0
        %1354 = vmatprep.subr.bf16.mxu0 0
        %1355 = vmatpush1.bf16.msra.mxu0 0
        %1356 = vmatprep.subr.bf16.mxu0 0
        %1357 = vmatpush1.bf16.msra.mxu0 0
        %1358 = vmatprep.subr.bf16.mxu0 0
        %1359 = vmatpush1.bf16.msra.mxu0 0
        %1360 = vmatprep.subr.bf16.mxu0 0
        %1361 = vmatpush1.bf16.msra.mxu0 %v1303
        %1362 = vmatprep.subr.bf16.mxu0 0
        %1363 = vmatpush2.bf16.msra.mxu0 0
        %1364 = vmatprep.subr.bf16.mxu0 0
        %1365 = vmatpush2.bf16.msra.mxu0 0
        %1366 = vmatprep.subr.bf16.mxu0 0
        %1367 = vmatpush2.bf16.msra.mxu0 0
        %1368 = vmatprep.subr.bf16.mxu0 0
        %1369 = vmatpush2.bf16.msra.mxu0 0
        %1370 = vmatprep.subr.bf16.mxu0 0
        %1371 = vmatpush2.bf16.msra.mxu0 0
        %1372 = vmatprep.subr.bf16.mxu0 0
        %1373 = vmatpush2.bf16.msra.mxu0 0
        %1374 = vmatprep.subr.bf16.mxu0 0
        %1375 = vmatpush2.bf16.msra.mxu0 0
        %1376 = vmatprep.subr.bf16.mxu0 0
        %1377 = vmatpush2.bf16.msra.mxu0 0
        %1378 = vmatprep.mubr.bf16.mxu0 0
        %1379 = vmatmul.mubr.bf16.gmra.mxu0 %v1294
        %v1380 = vpop.f32.mrf.mxu0
        %v1381 = vadd.f32 0.0, %v1380
        %v1382 = vpop.f32.mrf.mxu0
        %v1383 = vpop.f32.mrf.mxu0
        %v1384 = vpop.f32.mrf.mxu0
        %1385 = vdwg.mxu0
        %v1386 = vadd.f32 %v1257, %v1340
        %v1387 = vadd.f32 %v1258, %v1342
        %v1388 = vadd.f32 %v1259, %v1381
        %v1389 = vld [vmem:[%s2] sm:$0xff]
        %1391 = vset.pattern.permute.xlu0 0
        %1392 = vperm.xlu0 %1391, %v1389
        %v1393 = vpop.permute.xlu0 %1392
        %v1395 = vadd.f32 %v1386, %v1393
        %v1396 = vadd.f32 %v1387, %v1393
        %v1397 = vadd.f32 %v1388, %v1393
        %v1398 = vmax.f32 %v1395, 0.0
        %v1399 = vmax.f32 %v1396, 0.0
        %v1400 = vmax.f32 %v1397, 0.0
        %v1401 = vld [vmem:[%s3] sm:$0xff]
        %1403 = vset.pattern.permute.xlu0 0
        %1404 = vperm.xlu0 %1403, %v1401
        %v1405 = vpop.permute.xlu0 %1404
        %v1407 = vmul.f32 %v1398, %v1405
        %v1408 = vmul.f32 %v1399, %v1405
        %v1409 = vmul.f32 %v1400, %v1405
        %v1410 = vrot.slane %v1407, 4
        %v1411 = vadd.f32 %v1407, %v1410
        %v1412 = vrot.slane %v1411, 2
        %v1413 = vadd.f32 %v1411, %v1412
        %v1414 = vrot.slane %v1413, 1
        %v1415 = vadd.f32 %v1413, %v1414
        %v1416 = vrot.slane %v1408, 4
        %v1417 = vadd.f32 %v1408, %v1416
        %v1418 = vrot.slane %v1417, 2
        %v1419 = vadd.f32 %v1417, %v1418
        %v1420 = vrot.slane %v1419, 1
        %v1421 = vadd.f32 %v1419, %v1420
        %vm1422 = vcmask 556032
        %v1423 = vsel %vm1422, %v1409, 0.0
        %v1424 = vrot.slane %v1423, 4
        %v1425 = vadd.f32 %v1423, %v1424
        %v1426 = vrot.slane %v1425, 2
        %v1427 = vadd.f32 %v1425, %v1426
        %v1428 = vrot.slane %v1427, 1
        %v1429 = vadd.f32 %v1427, %v1428
        %s1430 = sld [smem:[#allocation2]]
        %v1431 = vstv %s1430
        %v1432 = vadd.f32 %v1415, %v1431
        %v1433 = vadd.f32 %v1421, %v1431
        %v1434 = vadd.f32 %v1429, %v1431
        %v1435 = vsub.f32 0.0, %v1432
        %v1436 = vsub.f32 0.0, %v1433
        %v1437 = vsub.f32 0.0, %v1434
        %v1438 = vmul.f32 %v1435, 1.442695
        %v1439 = vpow.pop %v1438
        %v1440 = vmul.f32 %v1436, 1.442695
        %v1441 = vpow.pop %v1440
        %v1442 = vmul.f32 %v1437, 1.442695
        %v1443 = vpow.pop %v1442
        %v1444 = vadd.f32 %v1439, 1.0
        %v1445 = vadd.f32 %v1441, 1.0
        %v1446 = vadd.f32 %v1443, 1.0
        %v1447 = vrcp.pop %v1444
        %v1448 = vmul.f32 1.0, %v1447
        %v1449 = vrcp.pop %v1445
        %v1450 = vmul.f32 1.0, %v1449
        %v1451 = vrcp.pop %v1446
        %v1452 = vmul.f32 1.0, %v1451
        %v1456 = vcombine.low %v1448, %v1450
        %v1458 = vunpack.c.l.s4 1966171168
        %v1459 = vunpack.c.0.s8 %v1458
        %v1460 = vlaneseq
        %v1461 = vshrl.u32 %v1460, 7
        %v1462 = vsub.s32 %v1459, %v1461
        %v1463 = vrot.slane %v1456, %v1462
        %v1465 = vunpack.c.l.s4 1966171168
        %v1466 = vunpack.c.0.s8 %v1465
        %v1467 = vlaneseq
        %v1468 = vshrl.u32 %v1467, 7
        %v1469 = vsub.s32 %v1466, %v1468
        %v1470 = vrot.slane %v1452, %v1469
        %v1471 = vcombine.low %v1463, %v1470
        %v1473 = vunpack.c.l.s4 1966171168
        %v1474 = vunpack.c.0.s8 %v1473
        %v1475 = vlaneseq
        %v1476 = vshrl.u32 %v1475, 7
        %v1477 = vsub.s32 %v1474, %v1476
        %v1478 = vrot.slane %v1471, %v1477
        %v1480 = vlaneseq
        %vm1481 = vcmp.ge.s32.totalorder %v1480, 0
        %vm1482 = vcmp.lt.s32.totalorder %v1480, 324
        %vm1483 = vmand %vm1481, %vm1482
        %1484 = vst.msk [vmem:[%s246] sm:$0x7] %vm1483, %v1478
        %vm1485 = vcmp.gt.f32.partialorder %v1432, 0.0
        %vm1486 = vcmp.gt.f32.partialorder %v1433, 0.0
        %vm1487 = vcmp.gt.f32.partialorder %v1434, 0.0
        %vm1488 = vmpackc.low %vm1486, %vm1485
        %vm1489 = vmpackc.low %vm1487, %vm1487
        %vm1490 = vmpackc.even %vm1489, %vm1488
        %v1491 = vsel %vm1490, 16843009, 0
        %v1492 = vlaneseq
        %v1493 = vshrl.u32 %v1492, 7
        %v1494 = vsub.s32 0, %v1493
        %v1495 = vrot.slane %v1491, %v1494
        %v1496 = vlaneseq
        %v1497 = vshrl.u32 %v1496, 7
        %v1498 = vsub.s32 2, %v1497
        %v1499 = vrot.slane %v1491, %v1498
        %v1500 = vlaneseq
        %v1501 = vshrl.u32 %v1500, 7
        %v1502 = vsub.s32 4, %v1501
        %v1503 = vrot.slane %v1491, %v1502
        %vm1504 = vnez %v1495
        %vm1505 = vnez %v1499
        %vm1506 = vnez %v1503
        %v1507 = vsel %vm1504, 16843009, 0
        %v1508 = vsel %vm1505, 16843009, 0
        %v1509 = vsel %vm1506, 16843009, 0
        %v1510 = vcombine.low %v1507, %v1508
        %v1512 = vunpack.c.l.s4 1966171168
        %v1513 = vunpack.c.0.s8 %v1512
        %v1514 = vlaneseq
        %v1515 = vshrl.u32 %v1514, 7
        %v1516 = vsub.s32 %v1513, %v1515
        %v1517 = vrot.slane %v1510, %v1516
        %v1519 = vunpack.c.l.s4 1966171168
        %v1520 = vunpack.c.0.s8 %v1519
        %v1521 = vlaneseq
        %v1522 = vshrl.u32 %v1521, 7
        %v1523 = vsub.s32 %v1520, %v1522
        %v1524 = vrot.slane %v1509, %v1523
        %v1525 = vcombine.low %v1517, %v1524
        %v1527 = vunpack.c.l.s4 1966171168
        %v1528 = vunpack.c.0.s8 %v1527
        %v1529 = vlaneseq
        %v1530 = vshrl.u32 %v1529, 7
        %v1531 = vsub.s32 %v1528, %v1530
        %v1532 = vrot.slane %v1525, %v1531
        %vm1533 = vcmask 1040384
        %vm1534 = vsmask.f32 0
        %vm1535 = vmand %vm1533, %vm1534
        %vm1536 = vcmask 1041409
        %vm1537 = vsmask.f32 1024
        %vm1538 = vmand %vm1536, %vm1537
        %vm1539 = vmor %vm1538, %vm1535
        %vm1540 = vcmask 550914
        %vm1541 = vsmask.f32 2048
        %vm1542 = vmand %vm1540, %vm1541
        %vm1543 = vmor %vm1542, %vm1539
        %v1544 = vld [vmem:[%s261] sm:$0x7]
        %v1545 = vsel %vm1543, %v1532, %v1544
        %1546 = vst [vmem:[%s261] sm:$0x7] %v1545
        %s1547 = sand.u32 %s140, 1
        %s1548 = scalar_lea.sflag [#allocation4], %s1547
        %s1549 = sand.u32 %s140, 1
        %s1550 = smul.addr %s1549, 3
        %s1551 = scalar_lea.vmem [#allocation3], %s1550
        %p1552 = scmp.lt.s32.totalorder %s22, 1
        %s1553 = scalar_select %p1552, %s22, 1
        %s1554 = smul.addr %s1553, 3
        %s1555 = scalar_lea.vmem %s6, %s1554
        // Predicated region
        $region41: #{tpu_custom_call.1} parent=39 // pred_check
          %p1556 = pneg %p150
        $region42: #{tpu_custom_call.1} parent=39 // pred_check_branch
          %1558 = sbr.rel (%p1556) target = $region44
        $region43: #{tpu_custom_call.1} parent=39 // pred_region
          %s1560 = ssub.s32 48, 48
          %1561 = vsyncadd %s1548, %s1560
          %s1562 = smul.addr %s22, 3
          %s1563 = smul.addr %s1562, 16
          %s1564 = scalar_lea.hbm %s5, %s1563
          %s1566 = sshll.u32 %s1551, 4
          %s1567 = int_to_ptr.vmem [resolvable:$true] %s1566
          %1569 = dma.vmem_to_hbm [thread:$0]  %s1567, 48, %s1564, %s1548
        $region44: #{tpu_custom_call.1} parent=39 // pred_fallthru
          _
        // Predicated region
        $region45: #{tpu_custom_call.1} parent=39 // pred_check
          %p1570 = pneg %p176
        $region46: #{tpu_custom_call.1} parent=39 // pred_check_branch
          %1572 = sbr.rel (%p1570) target = $region48
        $region47: #{tpu_custom_call.1} parent=39 // pred_region
          _
        $region48: #{tpu_custom_call.1} parent=39 // pred_fallthru
          _
      $region40: #{tpu_custom_call.1} parent=5 // pred_fallthru
        _
      %p1573 = scmp.le.s32.totalorder 2, %s17
      // Predicated region
      $region49: #{tpu_custom_call.1} parent=5 // pred_check
        %p1574 = pneg %p1573
      $region50: #{tpu_custom_call.1} parent=5 // pred_check_branch
        %1576 = sbr.rel (%p1574) target = $region52
      $region51: #{tpu_custom_call.1} parent=5 // pred_region
        %s1577 = ssub.s32 %s17, 2
        // Predicated region
        $region53: #{tpu_custom_call.1} parent=51 // pred_check
          %p1578 = pneg %p156
        $region54: #{tpu_custom_call.1} parent=51 // pred_check_branch
          %1580 = sbr.rel (%p1578) target = $region56
        $region55: #{tpu_custom_call.1} parent=51 // pred_region
          %s1581 = sand.u32 %s141, 1
          %s1582 = scalar_lea.sflag [#allocation4], %s1581
          %s1583 = sand.u32 %s141, 1
          %s1584 = smul.addr %s1583, 3
          %s1585 = scalar_lea.vmem [#allocation3], %s1584
          %1586 = dma.done %s1582, 48
        $region56: #{tpu_custom_call.1} parent=51 // pred_fallthru
          _
        // Predicated region
        $region57: #{tpu_custom_call.1} parent=51 // pred_check
          %p1587 = pneg %p182
        $region58: #{tpu_custom_call.1} parent=51 // pred_check_branch
          %1589 = sbr.rel (%p1587) target = $region60
        $region59: #{tpu_custom_call.1} parent=51 // pred_region
          %p1590 = scmp.lt.s32.totalorder %s23, 1
          %s1591 = scalar_select %p1590, %s23, 1
          %s1592 = smul.addr %s1591, 3
          %s1593 = scalar_lea.vmem %s6, %s1592
        $region60: #{tpu_custom_call.1} parent=51 // pred_fallthru
          _
      $region52: #{tpu_custom_call.1} parent=5 // pred_fallthru
        _
    $region6: #{tpu_custom_call.1} parent=1 // loop_footer
      %s21 = sadd.s32 1, %s17
    $region7: #{tpu_custom_call.1} parent=1 // loop_footer_branch
      %16 = sbr.rel target = $region3
    $region8: #{tpu_custom_call.1} parent=1 // loop_exit
      _
    %1594 = vsyncpa [#allocation4], 1
    %s1595 = scalar_lea.sflag [#allocation4], 1
    %1596 = vsyncpa %s1595, 1

</llo_original>
